<compile_context>
chip_gen: v7x
topology: tpu7x:2x2x1
jax: 0.10.0
libtpu: 0.0.40
codegen_flags: <defaults>
</compile_context>

<pallas_src>
import functools

import jax
import jax.numpy as jnp
from jax.experimental import pallas as pl
from jax.experimental.pallas import tpu as pltpu


_PARAM_ORDER = (
    "ln1_g", "ln1_b",          # LayerNorm 1
    "wqkv", "bqkv",            # fused QKV projection (E, 3E) / (1, 3E)
    "wo", "bo",                # output projection (E, E) / (1, E)
    "ln2_g", "ln2_b",          # LayerNorm 2
    "w1", "b1", "w2", "b2",    # FFN
)


# ---------------------------------------------------------------------------
# Kernel: one encoder layer for one block of batch elements.
# grid = (num_batch_blocks, num_layers); layer axis innermost ("arbitrary").
# x is carried across layer steps in a fp32 VMEM scratch; the output block is
# written only on the last layer step (it stays VMEM-resident across layers).
# ---------------------------------------------------------------------------
def _encoder_layer_kernel(x_ref,
                          ln1_g_ref, ln1_b_ref,
                          wqkv_ref, bqkv_ref, wo_ref, bo_ref,
                          ln2_g_ref, ln2_b_ref,
                          w1_ref, b1_ref, w2_ref, b2_ref,
                          o_ref, x_carry_ref, *, num_heads):
    Bb, S, E = x_ref.shape
    H = num_heads
    Dh = E // H
    M = Bb * S
    layer = pl.program_id(1)
    eps = 1e-5                                     # PyTorch LayerNorm default

    # Initialize the layer carry from the freshly DMA'd input block.
    @pl.when(layer == 0)
    def _():
        x_carry_ref[...] = x_ref[...].reshape(M, E).astype(jnp.float32)

    x = x_carry_ref[...]                           # (M, E) fp32

    def layernorm(v, g, b):
        mu = jnp.mean(v, axis=-1, keepdims=True)
        var = jnp.mean((v - mu) ** 2, axis=-1, keepdims=True)
        return (v - mu) * jax.lax.rsqrt(var + eps) * g + b

    # ----- self-attention block (pre-norm): x = x + MHA(LN1(x)) -----
    h = layernorm(x, ln1_g_ref[0], ln1_b_ref[0])   # (M, E) fp32

    # One lane-dense bf16 QKV matmul; 1/sqrt(Dh) is folded into the Q slice.
    qkv = (jnp.dot(h.astype(jnp.bfloat16), wqkv_ref[0],
                   preferred_element_type=jnp.float32)
           + bqkv_ref[0])                          # (M, 3E) fp32

    q3 = qkv[:, 0:E].reshape(Bb, S, E)
    k3 = qkv[:, E:2 * E].reshape(Bb, S, E)
    v3 = qkv[:, 2 * E:3 * E].reshape(Bb, S, E)

    # Attention core per head (S, Dh are tiny); batch-leading 3-D einsums.
    ctx_heads = []
    for hh in range(H):
        sl = slice(hh * Dh, (hh + 1) * Dh)
        qh = q3[:, :, sl].astype(jnp.bfloat16)     # (Bb, S, Dh)
        kh = k3[:, :, sl].astype(jnp.bfloat16)
        vh = v3[:, :, sl].astype(jnp.bfloat16)
        s = jnp.einsum("bqd,bkd->bqk", qh, kh,
                       preferred_element_type=jnp.float32)   # (Bb, S, S)
        s = s - jnp.max(s, axis=-1, keepdims=True)
        p = jnp.exp(s)
        p = p / jnp.sum(p, axis=-1, keepdims=True)           # exact softmax
        ctx_heads.append(
            jnp.einsum("bqk,bkd->bqd", p.astype(jnp.bfloat16), vh,
                       preferred_element_type=jnp.float32))  # (Bb, S, Dh)

    # Cheap lane concat to rebuild (M, E), then ONE output-projection matmul.
    ctx = jnp.concatenate(ctx_heads, axis=-1).reshape(M, E)
    attn = (jnp.dot(ctx.astype(jnp.bfloat16), wo_ref[0],
                    preferred_element_type=jnp.float32)
            + bo_ref[0])
    x = x + attn                                   # dropout = identity (eval)

    # ----- feed-forward block (pre-norm): x = x + W2 relu(W1 LN2(x)) -----
    h2 = layernorm(x, ln2_g_ref[0], ln2_b_ref[0])
    f = (jnp.dot(h2.astype(jnp.bfloat16), w1_ref[0],
                 preferred_element_type=jnp.float32) + b1_ref[0])
    f = jnp.maximum(f, 0.0)
    x = x + (jnp.dot(f.astype(jnp.bfloat16), w2_ref[0],
                     preferred_element_type=jnp.float32) + b2_ref[0])

    x_carry_ref[...] = x

    @pl.when(layer == pl.num_programs(1) - 1)
    def _():
        o_ref[...] = x.reshape(Bb, S, E).astype(o_ref.dtype)


# ---------------------------------------------------------------------------
# Wrapper: grid = (batch_blocks [parallel], layers [arbitrary])
# ---------------------------------------------------------------------------
def eegpt_style_predictor_forward(x, fused_params, *, num_heads, num_layers):
    B, S, E = x.shape

    # Fold batch elements into each grid step so matmul M = b_blk*S >= 128
    # (or as large as the batch allows).
    b_blk = min(B, max(1, int(pl.cdiv(128, S))))
    padded_B = int(pl.cdiv(B, b_blk)) * b_blk
    if padded_B != B:
        pad = jnp.zeros((padded_B - B, S, E), x.dtype)
        x = jnp.concatenate([x, pad], axis=0)
    num_b_blocks = padded_B // b_blk

    weight_args = [fused_params[k] for k in _PARAM_ORDER]

    def layer_block(arr):
        nd = arr.ndim
        return pl.BlockSpec((1,) + arr.shape[1:],
                            lambda b, l, _nd=nd: (l,) + (0,) * (_nd - 1))

    in_specs = [pl.BlockSpec((b_blk, S, E), lambda b, l: (b, 0, 0))]
    in_specs += [layer_block(a) for a in weight_args]
    out_spec = pl.BlockSpec((b_blk, S, E), lambda b, l: (b, 0, 0))

    kernel = functools.partial(_encoder_layer_kernel, num_heads=num_heads)
    out = pl.pallas_call(
        kernel,
        out_shape=jax.ShapeDtypeStruct((padded_B, S, E), x.dtype),
        grid_spec=pltpu.PrefetchScalarGridSpec(
            num_scalar_prefetch=0,
            grid=(num_b_blocks, num_layers),
            in_specs=in_specs,
            out_specs=out_spec,
            scratch_shapes=[pltpu.VMEM((b_blk * S, E), jnp.float32)],
        ),
        compiler_params=pltpu.CompilerParams(
            # batch blocks parallel (megacore), layer axis is a carried loop
            dimension_semantics=("parallel", "arbitrary"),
            # safe on all of v5e/v6e/v7x; re-check at production dims
            vmem_limit_bytes=32 * 1024 * 1024,
        ),
    )(x, *weight_args)
    return out[:B]


# ---------------------------------------------------------------------------
# Host-side weight packing: fused (E, 3E) QKV, bf16 matmul weights,
# 1/sqrt(Dh) folded into Q, stacked along a leading layer axis.
# ---------------------------------------------------------------------------
def _prep_layer(p, num_heads):
    E = p["wq_t"].shape[0]
    Dh = E // num_heads
    scale = 1.0 / (Dh ** 0.5)

    wqkv = jnp.concatenate([p["wq_t"] * scale, p["wk_t"], p["wv_t"]], axis=-1)
    bqkv = jnp.concatenate([p["bq"] * scale, p["bk"], p["bv"]], axis=-1)

    return dict(
        ln1_g=p["ln1_g"], ln1_b=p["ln1_b"],
        wqkv=wqkv.astype(jnp.bfloat16),            # (E, 3E)
        bqkv=bqkv,                                 # (1, 3E) fp32
        wo=p["wo_t"].astype(jnp.bfloat16),         # (E, E)
        bo=p["bo"],
        ln2_g=p["ln2_g"], ln2_b=p["ln2_b"],
        w1=p["w1_t"].astype(jnp.bfloat16), b1=p["b1"],
        w2=p["w2_t"].astype(jnp.bfloat16), b2=p["b2"],
    )


def prepare_fused_params(params, num_heads):
    per_layer = [_prep_layer(p, num_heads) for p in params]
    return {k: jnp.stack([lp[k] for lp in per_layer], axis=0)
            for k in per_layer[0]}


# ---------------------------------------------------------------------------
# Deterministic synthetic parameter initialization (not a checkpoint load)
# ---------------------------------------------------------------------------
def init_params(key, embed_dim, num_layers, num_heads, ff_dim):
    def unif(k, shape, fan_in):
        bound = 1.0 / (fan_in ** 0.5)
        return jax.random.uniform(k, shape, jnp.float32, -bound, bound)

    params = []
    for layer in range(num_layers):
        ks = jax.random.split(jax.random.fold_in(key, layer), 12)
        params.append(dict(
            ln1_g=jnp.ones((1, embed_dim), jnp.float32),
            ln1_b=jnp.zeros((1, embed_dim), jnp.float32),
            wq_t=unif(ks[0], (embed_dim, embed_dim), embed_dim),
            bq=unif(ks[1], (1, embed_dim), embed_dim),
            wk_t=unif(ks[2], (embed_dim, embed_dim), embed_dim),
            bk=unif(ks[3], (1, embed_dim), embed_dim),
            wv_t=unif(ks[4], (embed_dim, embed_dim), embed_dim),
            bv=unif(ks[5], (1, embed_dim), embed_dim),
            wo_t=unif(ks[6], (embed_dim, embed_dim), embed_dim),
            bo=unif(ks[7], (1, embed_dim), embed_dim),
            ln2_g=jnp.ones((1, embed_dim), jnp.float32),
            ln2_b=jnp.zeros((1, embed_dim), jnp.float32),
            w1_t=unif(ks[8], (embed_dim, ff_dim), embed_dim),
            b1=unif(ks[9], (1, ff_dim), embed_dim),
            w2_t=unif(ks[10], (ff_dim, embed_dim), ff_dim),
            b2=unif(ks[11], (1, embed_dim), ff_dim),
        ))
    return params


# ---------------------------------------------------------------------------
# Pure-JAX fp32 reference (mirrors PyTorch pre-norm TransformerEncoderLayer)
# ---------------------------------------------------------------------------
def reference_forward(x, params, num_heads):
    def layernorm(v, g, b):
        mu = jnp.mean(v, axis=-1, keepdims=True)
        var = jnp.mean((v - mu) ** 2, axis=-1, keepdims=True)
        return (v - mu) * jax.lax.rsqrt(var + 1e-5) * g + b

    B, S, E = x.shape
    Dh = E // num_heads
    for p in params:
        h = layernorm(x, p["ln1_g"][0], p["ln1_b"][0])
        q = h @ p["wq_t"] + p["bq"][0]
        k = h @ p["wk_t"] + p["bk"][0]
        v = h @ p["wv_t"] + p["bv"][0]
        q = q.reshape(B, S, num_heads, Dh).transpose(0, 2, 1, 3)
        k = k.reshape(B, S, num_heads, Dh).transpose(0, 2, 1, 3)
        v = v.reshape(B, S, num_heads, Dh).transpose(0, 2, 1, 3)
        s = jnp.einsum("bhqd,bhkd->bhqk", q, k) / (Dh ** 0.5)
        pr = jax.nn.softmax(s, axis=-1)
        a = jnp.einsum("bhqk,bhkd->bhqd", pr, v)
        a = a.transpose(0, 2, 1, 3).reshape(B, S, E)
        x = x + (a @ p["wo_t"] + p["bo"][0])
        h2 = layernorm(x, p["ln2_g"][0], p["ln2_b"][0])
        f = jnp.maximum(h2 @ p["w1_t"] + p["b1"][0], 0.0)
        x = x + (f @ p["w2_t"] + p["b2"][0])
    return x


if __name__ == "__main__":
    # Small shapes consistent with the module's forward:
    # (batch, seq, embed_dim) tokens with positional info already added.
    embed_dim, num_layers, num_heads, ff_dim = 32, 2, 4, 64
    dropout_transformer = 0.1            # identity at inference
    num_query_tokens_for_masked = 4      # parameter exists but is never used
                                         # in the original forward()
    B, S = 2, 8

    key = jax.random.PRNGKey(0)
    kx, kp = jax.random.split(key)
    x = jax.random.normal(kx, (B, S, embed_dim), jnp.float32)
    params = init_params(kp, embed_dim, num_layers, num_heads, ff_dim)
    fused_params = prepare_fused_params(params, num_heads)

    out = eegpt_style_predictor_forward(
        x, fused_params, num_heads=num_heads, num_layers=num_layers)
    out = jax.block_until_ready(out)

    ref = reference_forward(x, params, num_heads)
    assert out.shape == (B, S, embed_dim)
    # Tolerance accounts for bf16 MXU matmuls (fp32 accumulation); softmax is
    # exact fp32 (no approximate reciprocal).
    assert jnp.allclose(out, ref, atol=5e-2, rtol=5e-2), "mismatch vs JAX reference"

    print("KERNEL_OK")
</pallas_src>

<mosaic_0001>
module attributes {stable_mosaic.version = 11 : i64} {
  func.func @_encoder_layer_kernel(%arg0: i32, %arg1: i32, %arg2: memref<2x8x32xf32, #tpu.memory_space<vmem>>, %arg3: memref<1x1x32xf32, #tpu.memory_space<vmem>>, %arg4: memref<1x1x32xf32, #tpu.memory_space<vmem>>, %arg5: memref<1x32x96xbf16, #tpu.memory_space<vmem>>, %arg6: memref<1x1x96xf32, #tpu.memory_space<vmem>>, %arg7: memref<1x32x32xbf16, #tpu.memory_space<vmem>>, %arg8: memref<1x1x32xf32, #tpu.memory_space<vmem>>, %arg9: memref<1x1x32xf32, #tpu.memory_space<vmem>>, %arg10: memref<1x1x32xf32, #tpu.memory_space<vmem>>, %arg11: memref<1x32x64xbf16, #tpu.memory_space<vmem>>, %arg12: memref<1x1x64xf32, #tpu.memory_space<vmem>>, %arg13: memref<1x64x32xbf16, #tpu.memory_space<vmem>>, %arg14: memref<1x1x32xf32, #tpu.memory_space<vmem>>, %arg15: memref<2x8x32xf32, #tpu.memory_space<vmem>>, %arg16: memref<16x32xf32, #tpu.memory_space<vmem>>) attributes {dimension_semantics = [#tpu.dimension_semantics<parallel>, #tpu.dimension_semantics<arbitrary>], iteration_bounds = array<i64: 1, 2>, scalar_prefetch = 0 : i64, scratch_operands = 1 : i64, tpu.core_type = #tpu.core_type<tc>, window_params = [{transform_indices = @transform_0, window_bounds = array<i64: 2, 8, 32>}, {transform_indices = @transform_1, window_bounds = array<i64: 1, 1, 32>}, {transform_indices = @transform_2, window_bounds = array<i64: 1, 1, 32>}, {transform_indices = @transform_3, window_bounds = array<i64: 1, 32, 96>}, {transform_indices = @transform_4, window_bounds = array<i64: 1, 1, 96>}, {transform_indices = @transform_5, window_bounds = array<i64: 1, 32, 32>}, {transform_indices = @transform_6, window_bounds = array<i64: 1, 1, 32>}, {transform_indices = @transform_7, window_bounds = array<i64: 1, 1, 32>}, {transform_indices = @transform_8, window_bounds = array<i64: 1, 1, 32>}, {transform_indices = @transform_9, window_bounds = array<i64: 1, 32, 64>}, {transform_indices = @transform_10, window_bounds = array<i64: 1, 1, 64>}, {transform_indices = @transform_11, window_bounds = array<i64: 1, 64, 32>}, {transform_indices = @transform_12, window_bounds = array<i64: 1, 1, 32>}, {transform_indices = @transform_13, window_bounds = array<i64: 2, 8, 32>}]} {
    %c0_i32 = arith.constant 0 : i32
    %0 = arith.cmpi eq, %arg1, %c0_i32 : i32
    %1 = arith.extui %0 : i1 to i32
    %c0_i32_0 = arith.constant 0 : i32
    %2 = arith.cmpi ne, %1, %c0_i32_0 : i32
    scf.if %2 {
      %c0_71 = arith.constant 0 : index
      %c0_72 = arith.constant 0 : index
      %c0_73 = arith.constant 0 : index
      %176 = vector.load %arg2[%c0_71, %c0_72, %c0_73] : memref<2x8x32xf32, #tpu.memory_space<vmem>>, vector<2x8x32xf32>
      %177 = vector.shape_cast %176 : vector<2x8x32xf32> to vector<16x32xf32>
      %c0_74 = arith.constant 0 : index
      %c0_75 = arith.constant 0 : index
      %178 = vector.load %arg16[%c0_74, %c0_75] : memref<16x32xf32, #tpu.memory_space<vmem>>, vector<16x32xf32>
      tpu.vector_store %arg16[%c0_74, %c0_75], %177 {strides = array<i32>} : memref<16x32xf32, #tpu.memory_space<vmem>>, vector<16x32xf32>,
    } else {
    }
    %c0 = arith.constant 0 : index
    %c0_1 = arith.constant 0 : index
    %3 = vector.load %arg16[%c0, %c0_1] : memref<16x32xf32, #tpu.memory_space<vmem>>, vector<16x32xf32>
    %c0_2 = arith.constant 0 : index
    %c0_3 = arith.constant 0 : index
    %c0_4 = arith.constant 0 : index
    %4 = vector.load %arg3[%c0_2, %c0_3, %c0_4] : memref<1x1x32xf32, #tpu.memory_space<vmem>>, vector<1x1x32xf32>
    %5 = vector.shape_cast %4 : vector<1x1x32xf32> to vector<1x32xf32>
    %c0_5 = arith.constant 0 : index
    %c0_6 = arith.constant 0 : index
    %c0_7 = arith.constant 0 : index
    %6 = vector.load %arg4[%c0_5, %c0_6, %c0_7] : memref<1x1x32xf32, #tpu.memory_space<vmem>>, vector<1x1x32xf32>
    %7 = vector.shape_cast %6 : vector<1x1x32xf32> to vector<1x32xf32>
    %cst = arith.constant dense<0.000000e+00> : vector<16xf32>
    %8 = vector.multi_reduction <add>, %3, %cst [1] : vector<16x32xf32> to vector<16xf32>
    %9 = vector.shape_cast %8 : vector<16xf32> to vector<16x1xf32>
    %cst_8 = arith.constant 3.200000e+01 : f32
    %10 = vector.broadcast %cst_8 : f32 to vector<16x1xf32>
    %11 = arith.divf %9, %10 : vector<16x1xf32>
    %12 = vector.broadcast %11 : vector<16x1xf32> to vector<16x32xf32>
    %13 = arith.subf %3, %12 : vector<16x32xf32>
    %14 = arith.mulf %13, %13 : vector<16x32xf32>
    %cst_9 = arith.constant dense<0.000000e+00> : vector<16xf32>
    %15 = vector.multi_reduction <add>, %14, %cst_9 [1] : vector<16x32xf32> to vector<16xf32>
    %16 = vector.shape_cast %15 : vector<16xf32> to vector<16x1xf32>
    %cst_10 = arith.constant 3.200000e+01 : f32
    %17 = vector.broadcast %cst_10 : f32 to vector<16x1xf32>
    %18 = arith.divf %16, %17 : vector<16x1xf32>
    %19 = vector.broadcast %11 : vector<16x1xf32> to vector<16x32xf32>
    %20 = arith.subf %3, %19 : vector<16x32xf32>
    %cst_11 = arith.constant 9.99999974E-6 : f32
    %21 = vector.broadcast %cst_11 : f32 to vector<16x1xf32>
    %22 = arith.addf %18, %21 : vector<16x1xf32>
    %23 = math.rsqrt %22 : vector<16x1xf32>
    %24 = vector.broadcast %23 : vector<16x1xf32> to vector<16x32xf32>
    %25 = arith.mulf %20, %24 : vector<16x32xf32>
    %26 = vector.broadcast %5 : vector<1x32xf32> to vector<16x32xf32>
    %27 = arith.mulf %25, %26 : vector<16x32xf32>
    %28 = vector.broadcast %7 : vector<1x32xf32> to vector<16x32xf32>
    %29 = arith.addf %27, %28 : vector<16x32xf32>
    %30 = arith.truncf %29 : vector<16x32xf32> to vector<16x32xbf16>
    %c0_12 = arith.constant 0 : index
    %c0_13 = arith.constant 0 : index
    %c0_14 = arith.constant 0 : index
    %31 = vector.load %arg5[%c0_12, %c0_13, %c0_14] : memref<1x32x96xbf16, #tpu.memory_space<vmem>>, vector<1x32x96xbf16>
    %32 = vector.shape_cast %31 : vector<1x32x96xbf16> to vector<32x96xbf16>
    %cst_15 = arith.constant dense<0.000000e+00> : vector<16x96xf32>
    %33 = tpu.matmul %30, %32, %cst_15 {dimension_numbers = #tpu.dot_dimension_numbers<[1], [0], [0], [1], [0, 0, 1, 1], [], []>} : vector<16x32xbf16>, vector<32x96xbf16>, vector<16x96xf32> -> vector<16x96xf32>
    %c0_16 = arith.constant 0 : index
    %c0_17 = arith.constant 0 : index
    %c0_18 = arith.constant 0 : index
    %34 = vector.load %arg6[%c0_16, %c0_17, %c0_18] : memref<1x1x96xf32, #tpu.memory_space<vmem>>, vector<1x1x96xf32>
    %35 = vector.shape_cast %34 : vector<1x1x96xf32> to vector<1x96xf32>
    %36 = vector.broadcast %35 : vector<1x96xf32> to vector<16x96xf32>
    %37 = arith.addf %33, %36 : vector<16x96xf32>
    %38 = vector.extract_strided_slice %37 {offsets = [0, 0], sizes = [16, 32], strides = [1, 1]} : vector<16x96xf32> to vector<16x32xf32>
    %39 = vector.shape_cast %38 : vector<16x32xf32> to vector<2x8x32xf32>
    %40 = vector.extract_strided_slice %37 {offsets = [0, 32], sizes = [16, 32], strides = [1, 1]} : vector<16x96xf32> to vector<16x32xf32>
    %41 = vector.shape_cast %40 : vector<16x32xf32> to vector<2x8x32xf32>
    %42 = vector.extract_strided_slice %37 {offsets = [0, 64], sizes = [16, 32], strides = [1, 1]} : vector<16x96xf32> to vector<16x32xf32>
    %43 = vector.shape_cast %42 : vector<16x32xf32> to vector<2x8x32xf32>
    %44 = vector.extract_strided_slice %39 {offsets = [0, 0, 0], sizes = [2, 8, 8], strides = [1, 1, 1]} : vector<2x8x32xf32> to vector<2x8x8xf32>
    %45 = arith.truncf %44 : vector<2x8x8xf32> to vector<2x8x8xbf16>
    %46 = vector.extract_strided_slice %41 {offsets = [0, 0, 0], sizes = [2, 8, 8], strides = [1, 1, 1]} : vector<2x8x32xf32> to vector<2x8x8xf32>
    %47 = arith.truncf %46 : vector<2x8x8xf32> to vector<2x8x8xbf16>
    %48 = vector.extract_strided_slice %43 {offsets = [0, 0, 0], sizes = [2, 8, 8], strides = [1, 1, 1]} : vector<2x8x32xf32> to vector<2x8x8xf32>
    %49 = arith.truncf %48 : vector<2x8x8xf32> to vector<2x8x8xbf16>
    "tpu.trace_start"() <{level = 10 : i32, message = "bqd,bkd->bqk"}> : () -> ()
    %cst_19 = arith.constant dense<0.000000e+00> : vector<2x8x8xf32>
    %50 = tpu.matmul %45, %47, %cst_19 {dimension_numbers = #tpu.dot_dimension_numbers<[2], [2], [1], [1], [0, 0, 0, 1, 1, 1], [0], [0]>} : vector<2x8x8xbf16>, vector<2x8x8xbf16>, vector<2x8x8xf32> -> vector<2x8x8xf32>
    "tpu.trace_stop"() : () -> ()
    %cst_20 = arith.constant dense<0xFF800000> : vector<2x8xf32>
    %51 = vector.multi_reduction <maximumf>, %50, %cst_20 [2] : vector<2x8x8xf32> to vector<2x8xf32>
    %52 = vector.shape_cast %51 : vector<2x8xf32> to vector<2x8x1xf32>
    %53 = vector.broadcast %52 : vector<2x8x1xf32> to vector<2x8x8xf32>
    %54 = arith.subf %50, %53 : vector<2x8x8xf32>
    %55 = math.exp %54 : vector<2x8x8xf32>
    %cst_21 = arith.constant dense<0.000000e+00> : vector<2x8xf32>
    %56 = vector.multi_reduction <add>, %55, %cst_21 [2] : vector<2x8x8xf32> to vector<2x8xf32>
    %57 = vector.shape_cast %56 : vector<2x8xf32> to vector<2x8x1xf32>
    %58 = vector.broadcast %57 : vector<2x8x1xf32> to vector<2x8x8xf32>
    %59 = arith.divf %55, %58 : vector<2x8x8xf32>
    %60 = arith.truncf %59 : vector<2x8x8xf32> to vector<2x8x8xbf16>
    "tpu.trace_start"() <{level = 10 : i32, message = "bqk,bkd->bqd"}> : () -> ()
    %cst_22 = arith.constant dense<0.000000e+00> : vector<2x8x8xf32>
    %61 = tpu.matmul %60, %49, %cst_22 {dimension_numbers = #tpu.dot_dimension_numbers<[2], [1], [1], [2], [0, 0, 0, 1, 1, 2], [0], [0]>} : vector<2x8x8xbf16>, vector<2x8x8xbf16>, vector<2x8x8xf32> -> vector<2x8x8xf32>
    "tpu.trace_stop"() : () -> ()
    %62 = vector.extract_strided_slice %39 {offsets = [0, 0, 8], sizes = [2, 8, 8], strides = [1, 1, 1]} : vector<2x8x32xf32> to vector<2x8x8xf32>
    %63 = arith.truncf %62 : vector<2x8x8xf32> to vector<2x8x8xbf16>
    %64 = vector.extract_strided_slice %41 {offsets = [0, 0, 8], sizes = [2, 8, 8], strides = [1, 1, 1]} : vector<2x8x32xf32> to vector<2x8x8xf32>
    %65 = arith.truncf %64 : vector<2x8x8xf32> to vector<2x8x8xbf16>
    %66 = vector.extract_strided_slice %43 {offsets = [0, 0, 8], sizes = [2, 8, 8], strides = [1, 1, 1]} : vector<2x8x32xf32> to vector<2x8x8xf32>
    %67 = arith.truncf %66 : vector<2x8x8xf32> to vector<2x8x8xbf16>
    "tpu.trace_start"() <{level = 10 : i32, message = "bqd,bkd->bqk"}> : () -> ()
    %cst_23 = arith.constant dense<0.000000e+00> : vector<2x8x8xf32>
    %68 = tpu.matmul %63, %65, %cst_23 {dimension_numbers = #tpu.dot_dimension_numbers<[2], [2], [1], [1], [0, 0, 0, 1, 1, 1], [0], [0]>} : vector<2x8x8xbf16>, vector<2x8x8xbf16>, vector<2x8x8xf32> -> vector<2x8x8xf32>
    "tpu.trace_stop"() : () -> ()
    %cst_24 = arith.constant dense<0xFF800000> : vector<2x8xf32>
    %69 = vector.multi_reduction <maximumf>, %68, %cst_24 [2] : vector<2x8x8xf32> to vector<2x8xf32>
    %70 = vector.shape_cast %69 : vector<2x8xf32> to vector<2x8x1xf32>
    %71 = vector.broadcast %70 : vector<2x8x1xf32> to vector<2x8x8xf32>
    %72 = arith.subf %68, %71 : vector<2x8x8xf32>
    %73 = math.exp %72 : vector<2x8x8xf32>
    %cst_25 = arith.constant dense<0.000000e+00> : vector<2x8xf32>
    %74 = vector.multi_reduction <add>, %73, %cst_25 [2] : vector<2x8x8xf32> to vector<2x8xf32>
    %75 = vector.shape_cast %74 : vector<2x8xf32> to vector<2x8x1xf32>
    %76 = vector.broadcast %75 : vector<2x8x1xf32> to vector<2x8x8xf32>
    %77 = arith.divf %73, %76 : vector<2x8x8xf32>
    %78 = arith.truncf %77 : vector<2x8x8xf32> to vector<2x8x8xbf16>
    "tpu.trace_start"() <{level = 10 : i32, message = "bqk,bkd->bqd"}> : () -> ()
    %cst_26 = arith.constant dense<0.000000e+00> : vector<2x8x8xf32>
    %79 = tpu.matmul %78, %67, %cst_26 {dimension_numbers = #tpu.dot_dimension_numbers<[2], [1], [1], [2], [0, 0, 0, 1, 1, 2], [0], [0]>} : vector<2x8x8xbf16>, vector<2x8x8xbf16>, vector<2x8x8xf32> -> vector<2x8x8xf32>
    "tpu.trace_stop"() : () -> ()
    %80 = vector.extract_strided_slice %39 {offsets = [0, 0, 16], sizes = [2, 8, 8], strides = [1, 1, 1]} : vector<2x8x32xf32> to vector<2x8x8xf32>
    %81 = arith.truncf %80 : vector<2x8x8xf32> to vector<2x8x8xbf16>
    %82 = vector.extract_strided_slice %41 {offsets = [0, 0, 16], sizes = [2, 8, 8], strides = [1, 1, 1]} : vector<2x8x32xf32> to vector<2x8x8xf32>
    %83 = arith.truncf %82 : vector<2x8x8xf32> to vector<2x8x8xbf16>
    %84 = vector.extract_strided_slice %43 {offsets = [0, 0, 16], sizes = [2, 8, 8], strides = [1, 1, 1]} : vector<2x8x32xf32> to vector<2x8x8xf32>
    %85 = arith.truncf %84 : vector<2x8x8xf32> to vector<2x8x8xbf16>
    "tpu.trace_start"() <{level = 10 : i32, message = "bqd,bkd->bqk"}> : () -> ()
    %cst_27 = arith.constant dense<0.000000e+00> : vector<2x8x8xf32>
    %86 = tpu.matmul %81, %83, %cst_27 {dimension_numbers = #tpu.dot_dimension_numbers<[2], [2], [1], [1], [0, 0, 0, 1, 1, 1], [0], [0]>} : vector<2x8x8xbf16>, vector<2x8x8xbf16>, vector<2x8x8xf32> -> vector<2x8x8xf32>
    "tpu.trace_stop"() : () -> ()
    %cst_28 = arith.constant dense<0xFF800000> : vector<2x8xf32>
    %87 = vector.multi_reduction <maximumf>, %86, %cst_28 [2] : vector<2x8x8xf32> to vector<2x8xf32>
    %88 = vector.shape_cast %87 : vector<2x8xf32> to vector<2x8x1xf32>
    %89 = vector.broadcast %88 : vector<2x8x1xf32> to vector<2x8x8xf32>
    %90 = arith.subf %86, %89 : vector<2x8x8xf32>
    %91 = math.exp %90 : vector<2x8x8xf32>
    %cst_29 = arith.constant dense<0.000000e+00> : vector<2x8xf32>
    %92 = vector.multi_reduction <add>, %91, %cst_29 [2] : vector<2x8x8xf32> to vector<2x8xf32>
    %93 = vector.shape_cast %92 : vector<2x8xf32> to vector<2x8x1xf32>
    %94 = vector.broadcast %93 : vector<2x8x1xf32> to vector<2x8x8xf32>
    %95 = arith.divf %91, %94 : vector<2x8x8xf32>
    %96 = arith.truncf %95 : vector<2x8x8xf32> to vector<2x8x8xbf16>
    "tpu.trace_start"() <{level = 10 : i32, message = "bqk,bkd->bqd"}> : () -> ()
    %cst_30 = arith.constant dense<0.000000e+00> : vector<2x8x8xf32>
    %97 = tpu.matmul %96, %85, %cst_30 {dimension_numbers = #tpu.dot_dimension_numbers<[2], [1], [1], [2], [0, 0, 0, 1, 1, 2], [0], [0]>} : vector<2x8x8xbf16>, vector<2x8x8xbf16>, vector<2x8x8xf32> -> vector<2x8x8xf32>
    "tpu.trace_stop"() : () -> ()
    %98 = vector.extract_strided_slice %39 {offsets = [0, 0, 24], sizes = [2, 8, 8], strides = [1, 1, 1]} : vector<2x8x32xf32> to vector<2x8x8xf32>
    %99 = arith.truncf %98 : vector<2x8x8xf32> to vector<2x8x8xbf16>
    %100 = vector.extract_strided_slice %41 {offsets = [0, 0, 24], sizes = [2, 8, 8], strides = [1, 1, 1]} : vector<2x8x32xf32> to vector<2x8x8xf32>
    %101 = arith.truncf %100 : vector<2x8x8xf32> to vector<2x8x8xbf16>
    %102 = vector.extract_strided_slice %43 {offsets = [0, 0, 24], sizes = [2, 8, 8], strides = [1, 1, 1]} : vector<2x8x32xf32> to vector<2x8x8xf32>
    %103 = arith.truncf %102 : vector<2x8x8xf32> to vector<2x8x8xbf16>
    "tpu.trace_start"() <{level = 10 : i32, message = "bqd,bkd->bqk"}> : () -> ()
    %cst_31 = arith.constant dense<0.000000e+00> : vector<2x8x8xf32>
    %104 = tpu.matmul %99, %101, %cst_31 {dimension_numbers = #tpu.dot_dimension_numbers<[2], [2], [1], [1], [0, 0, 0, 1, 1, 1], [0], [0]>} : vector<2x8x8xbf16>, vector<2x8x8xbf16>, vector<2x8x8xf32> -> vector<2x8x8xf32>
    "tpu.trace_stop"() : () -> ()
    %cst_32 = arith.constant dense<0xFF800000> : vector<2x8xf32>
    %105 = vector.multi_reduction <maximumf>, %104, %cst_32 [2] : vector<2x8x8xf32> to vector<2x8xf32>
    %106 = vector.shape_cast %105 : vector<2x8xf32> to vector<2x8x1xf32>
    %107 = vector.broadcast %106 : vector<2x8x1xf32> to vector<2x8x8xf32>
    %108 = arith.subf %104, %107 : vector<2x8x8xf32>
    %109 = math.exp %108 : vector<2x8x8xf32>
    %cst_33 = arith.constant dense<0.000000e+00> : vector<2x8xf32>
    %110 = vector.multi_reduction <add>, %109, %cst_33 [2] : vector<2x8x8xf32> to vector<2x8xf32>
    %111 = vector.shape_cast %110 : vector<2x8xf32> to vector<2x8x1xf32>
    %112 = vector.broadcast %111 : vector<2x8x1xf32> to vector<2x8x8xf32>
    %113 = arith.divf %109, %112 : vector<2x8x8xf32>
    %114 = arith.truncf %113 : vector<2x8x8xf32> to vector<2x8x8xbf16>
    "tpu.trace_start"() <{level = 10 : i32, message = "bqk,bkd->bqd"}> : () -> ()
    %cst_34 = arith.constant dense<0.000000e+00> : vector<2x8x8xf32>
    %115 = tpu.matmul %114, %103, %cst_34 {dimension_numbers = #tpu.dot_dimension_numbers<[2], [1], [1], [2], [0, 0, 0, 1, 1, 2], [0], [0]>} : vector<2x8x8xbf16>, vector<2x8x8xbf16>, vector<2x8x8xf32> -> vector<2x8x8xf32>
    "tpu.trace_stop"() : () -> ()
    %116 = tpu.concatenate %61, %79, %97, %115 in 2 : vector<2x8x8xf32>, vector<2x8x8xf32>, vector<2x8x8xf32>, vector<2x8x8xf32> -> vector<2x8x32xf32>
    %117 = vector.shape_cast %116 : vector<2x8x32xf32> to vector<16x32xf32>
    %118 = arith.truncf %117 : vector<16x32xf32> to vector<16x32xbf16>
    %c0_35 = arith.constant 0 : index
    %c0_36 = arith.constant 0 : index
    %c0_37 = arith.constant 0 : index
    %119 = vector.load %arg7[%c0_35, %c0_36, %c0_37] : memref<1x32x32xbf16, #tpu.memory_space<vmem>>, vector<1x32x32xbf16>
    %120 = vector.shape_cast %119 : vector<1x32x32xbf16> to vector<32x32xbf16>
    %cst_38 = arith.constant dense<0.000000e+00> : vector<16x32xf32>
    %121 = tpu.matmul %118, %120, %cst_38 {dimension_numbers = #tpu.dot_dimension_numbers<[1], [0], [0], [1], [0, 0, 1, 1], [], []>} : vector<16x32xbf16>, vector<32x32xbf16>, vector<16x32xf32> -> vector<16x32xf32>
    %c0_39 = arith.constant 0 : index
    %c0_40 = arith.constant 0 : index
    %c0_41 = arith.constant 0 : index
    %122 = vector.load %arg8[%c0_39, %c0_40, %c0_41] : memref<1x1x32xf32, #tpu.memory_space<vmem>>, vector<1x1x32xf32>
    %123 = vector.shape_cast %122 : vector<1x1x32xf32> to vector<1x32xf32>
    %124 = vector.broadcast %123 : vector<1x32xf32> to vector<16x32xf32>
    %125 = arith.addf %121, %124 : vector<16x32xf32>
    %126 = arith.addf %3, %125 : vector<16x32xf32>
    %c0_42 = arith.constant 0 : index
    %c0_43 = arith.constant 0 : index
    %c0_44 = arith.constant 0 : index
    %127 = vector.load %arg9[%c0_42, %c0_43, %c0_44] : memref<1x1x32xf32, #tpu.memory_space<vmem>>, vector<1x1x32xf32>
    %128 = vector.shape_cast %127 : vector<1x1x32xf32> to vector<1x32xf32>
    %c0_45 = arith.constant 0 : index
    %c0_46 = arith.constant 0 : index
    %c0_47 = arith.constant 0 : index
    %129 = vector.load %arg10[%c0_45, %c0_46, %c0_47] : memref<1x1x32xf32, #tpu.memory_space<vmem>>, vector<1x1x32xf32>
    %130 = vector.shape_cast %129 : vector<1x1x32xf32> to vector<1x32xf32>
    %cst_48 = arith.constant dense<0.000000e+00> : vector<16xf32>
    %131 = vector.multi_reduction <add>, %126, %cst_48 [1] : vector<16x32xf32> to vector<16xf32>
    %132 = vector.shape_cast %131 : vector<16xf32> to vector<16x1xf32>
    %cst_49 = arith.constant 3.200000e+01 : f32
    %133 = vector.broadcast %cst_49 : f32 to vector<16x1xf32>
    %134 = arith.divf %132, %133 : vector<16x1xf32>
    %135 = vector.broadcast %134 : vector<16x1xf32> to vector<16x32xf32>
    %136 = arith.subf %126, %135 : vector<16x32xf32>
    %137 = arith.mulf %136, %136 : vector<16x32xf32>
    %cst_50 = arith.constant dense<0.000000e+00> : vector<16xf32>
    %138 = vector.multi_reduction <add>, %137, %cst_50 [1] : vector<16x32xf32> to vector<16xf32>
    %139 = vector.shape_cast %138 : vector<16xf32> to vector<16x1xf32>
    %cst_51 = arith.constant 3.200000e+01 : f32
    %140 = vector.broadcast %cst_51 : f32 to vector<16x1xf32>
    %141 = arith.divf %139, %140 : vector<16x1xf32>
    %142 = vector.broadcast %134 : vector<16x1xf32> to vector<16x32xf32>
    %143 = arith.subf %126, %142 : vector<16x32xf32>
    %cst_52 = arith.constant 9.99999974E-6 : f32
    %144 = vector.broadcast %cst_52 : f32 to vector<16x1xf32>
    %145 = arith.addf %141, %144 : vector<16x1xf32>
    %146 = math.rsqrt %145 : vector<16x1xf32>
    %147 = vector.broadcast %146 : vector<16x1xf32> to vector<16x32xf32>
    %148 = arith.mulf %143, %147 : vector<16x32xf32>
    %149 = vector.broadcast %128 : vector<1x32xf32> to vector<16x32xf32>
    %150 = arith.mulf %148, %149 : vector<16x32xf32>
    %151 = vector.broadcast %130 : vector<1x32xf32> to vector<16x32xf32>
    %152 = arith.addf %150, %151 : vector<16x32xf32>
    %153 = arith.truncf %152 : vector<16x32xf32> to vector<16x32xbf16>
    %c0_53 = arith.constant 0 : index
    %c0_54 = arith.constant 0 : index
    %c0_55 = arith.constant 0 : index
    %154 = vector.load %arg11[%c0_53, %c0_54, %c0_55] : memref<1x32x64xbf16, #tpu.memory_space<vmem>>, vector<1x32x64xbf16>
    %155 = vector.shape_cast %154 : vector<1x32x64xbf16> to vector<32x64xbf16>
    %cst_56 = arith.constant dense<0.000000e+00> : vector<16x64xf32>
    %156 = tpu.matmul %153, %155, %cst_56 {dimension_numbers = #tpu.dot_dimension_numbers<[1], [0], [0], [1], [0, 0, 1, 1], [], []>} : vector<16x32xbf16>, vector<32x64xbf16>, vector<16x64xf32> -> vector<16x64xf32>
    %c0_57 = arith.constant 0 : index
    %c0_58 = arith.constant 0 : index
    %c0_59 = arith.constant 0 : index
    %157 = vector.load %arg12[%c0_57, %c0_58, %c0_59] : memref<1x1x64xf32, #tpu.memory_space<vmem>>, vector<1x1x64xf32>
    %158 = vector.shape_cast %157 : vector<1x1x64xf32> to vector<1x64xf32>
    %159 = vector.broadcast %158 : vector<1x64xf32> to vector<16x64xf32>
    %160 = arith.addf %156, %159 : vector<16x64xf32>
    %cst_60 = arith.constant 0.000000e+00 : f32
    %161 = vector.broadcast %cst_60 : f32 to vector<16x64xf32>
    %162 = arith.maximumf %160, %161 : vector<16x64xf32>
    %163 = arith.truncf %162 : vector<16x64xf32> to vector<16x64xbf16>
    %c0_61 = arith.constant 0 : index
    %c0_62 = arith.constant 0 : index
    %c0_63 = arith.constant 0 : index
    %164 = vector.load %arg13[%c0_61, %c0_62, %c0_63] : memref<1x64x32xbf16, #tpu.memory_space<vmem>>, vector<1x64x32xbf16>
    %165 = vector.shape_cast %164 : vector<1x64x32xbf16> to vector<64x32xbf16>
    %cst_64 = arith.constant dense<0.000000e+00> : vector<16x32xf32>
    %166 = tpu.matmul %163, %165, %cst_64 {dimension_numbers = #tpu.dot_dimension_numbers<[1], [0], [0], [1], [0, 0, 1, 1], [], []>} : vector<16x64xbf16>, vector<64x32xbf16>, vector<16x32xf32> -> vector<16x32xf32>
    %c0_65 = arith.constant 0 : index
    %c0_66 = arith.constant 0 : index
    %c0_67 = arith.constant 0 : index
    %167 = vector.load %arg14[%c0_65, %c0_66, %c0_67] : memref<1x1x32xf32, #tpu.memory_space<vmem>>, vector<1x1x32xf32>
    %168 = vector.shape_cast %167 : vector<1x1x32xf32> to vector<1x32xf32>
    %169 = vector.broadcast %168 : vector<1x32xf32> to vector<16x32xf32>
    %170 = arith.addf %166, %169 : vector<16x32xf32>
    %171 = arith.addf %126, %170 : vector<16x32xf32>
    %c0_68 = arith.constant 0 : index
    %c0_69 = arith.constant 0 : index
    %172 = vector.load %arg16[%c0_68, %c0_69] : memref<16x32xf32, #tpu.memory_space<vmem>>, vector<16x32xf32>
    tpu.vector_store %arg16[%c0_68, %c0_69], %171 {strides = array<i32>} : memref<16x32xf32, #tpu.memory_space<vmem>>, vector<16x32xf32>,
    %c1_i32 = arith.constant 1 : i32
    %173 = arith.cmpi eq, %arg1, %c1_i32 : i32
    %174 = arith.extui %173 : i1 to i32
    %c0_i32_70 = arith.constant 0 : i32
    %175 = arith.cmpi ne, %174, %c0_i32_70 : i32
    scf.if %175 {
      %176 = vector.shape_cast %171 : vector<16x32xf32> to vector<2x8x32xf32>
      %c0_71 = arith.constant 0 : index
      %c0_72 = arith.constant 0 : index
      %c0_73 = arith.constant 0 : index
      %177 = vector.load %arg15[%c0_71, %c0_72, %c0_73] : memref<2x8x32xf32, #tpu.memory_space<vmem>>, vector<2x8x32xf32>
      tpu.vector_store %arg15[%c0_71, %c0_72, %c0_73], %176 {strides = array<i32>} : memref<2x8x32xf32, #tpu.memory_space<vmem>>, vector<2x8x32xf32>,
    } else {
    }
    return
  }
  func.func @transform_0(%arg0: i32, %arg1: i32) -> (i32, i32, i32) {
    %c0_i32 = arith.constant 0 : i32
    %c0_i32_0 = arith.constant 0 : i32
    %c0_i32_1 = arith.constant 0 : i32
    return %arg0, %c0_i32, %c0_i32_0 : i32, i32, i32
  }
  func.func @transform_1(%arg0: i32, %arg1: i32) -> (i32, i32, i32) {
    %c0_i32 = arith.constant 0 : i32
    %c0_i32_0 = arith.constant 0 : i32
    %c0_i32_1 = arith.constant 0 : i32
    return %arg1, %c0_i32, %c0_i32_0 : i32, i32, i32
  }
  func.func @transform_2(%arg0: i32, %arg1: i32) -> (i32, i32, i32) {
    %c0_i32 = arith.constant 0 : i32
    %c0_i32_0 = arith.constant 0 : i32
    %c0_i32_1 = arith.constant 0 : i32
    return %arg1, %c0_i32, %c0_i32_0 : i32, i32, i32
  }
  func.func @transform_3(%arg0: i32, %arg1: i32) -> (i32, i32, i32) {
    %c0_i32 = arith.constant 0 : i32
    %c0_i32_0 = arith.constant 0 : i32
    %c0_i32_1 = arith.constant 0 : i32
    return %arg1, %c0_i32, %c0_i32_0 : i32, i32, i32
  }
  func.func @transform_4(%arg0: i32, %arg1: i32) -> (i32, i32, i32) {
    %c0_i32 = arith.constant 0 : i32
    %c0_i32_0 = arith.constant 0 : i32
    %c0_i32_1 = arith.constant 0 : i32
    return %arg1, %c0_i32, %c0_i32_0 : i32, i32, i32
  }
  func.func @transform_5(%arg0: i32, %arg1: i32) -> (i32, i32, i32) {
    %c0_i32 = arith.constant 0 : i32
    %c0_i32_0 = arith.constant 0 : i32
    %c0_i32_1 = arith.constant 0 : i32
    return %arg1, %c0_i32, %c0_i32_0 : i32, i32, i32
  }
  func.func @transform_6(%arg0: i32, %arg1: i32) -> (i32, i32, i32) {
    %c0_i32 = arith.constant 0 : i32
    %c0_i32_0 = arith.constant 0 : i32
    %c0_i32_1 = arith.constant 0 : i32
    return %arg1, %c0_i32, %c0_i32_0 : i32, i32, i32
  }
  func.func @transform_7(%arg0: i32, %arg1: i32) -> (i32, i32, i32) {
    %c0_i32 = arith.constant 0 : i32
    %c0_i32_0 = arith.constant 0 : i32
    %c0_i32_1 = arith.constant 0 : i32
    return %arg1, %c0_i32, %c0_i32_0 : i32, i32, i32
  }
  func.func @transform_8(%arg0: i32, %arg1: i32) -> (i32, i32, i32) {
    %c0_i32 = arith.constant 0 : i32
    %c0_i32_0 = arith.constant 0 : i32
    %c0_i32_1 = arith.constant 0 : i32
    return %arg1, %c0_i32, %c0_i32_0 : i32, i32, i32
  }
  func.func @transform_9(%arg0: i32, %arg1: i32) -> (i32, i32, i32) {
    %c0_i32 = arith.constant 0 : i32
    %c0_i32_0 = arith.constant 0 : i32
    %c0_i32_1 = arith.constant 0 : i32
    return %arg1, %c0_i32, %c0_i32_0 : i32, i32, i32
  }
  func.func @transform_10(%arg0: i32, %arg1: i32) -> (i32, i32, i32) {
    %c0_i32 = arith.constant 0 : i32
    %c0_i32_0 = arith.constant 0 : i32
    %c0_i32_1 = arith.constant 0 : i32
    return %arg1, %c0_i32, %c0_i32_0 : i32, i32, i32
  }
  func.func @transform_11(%arg0: i32, %arg1: i32) -> (i32, i32, i32) {
    %c0_i32 = arith.constant 0 : i32
    %c0_i32_0 = arith.constant 0 : i32
    %c0_i32_1 = arith.constant 0 : i32
    return %arg1, %c0_i32, %c0_i32_0 : i32, i32, i32
  }
  func.func @transform_12(%arg0: i32, %arg1: i32) -> (i32, i32, i32) {
    %c0_i32 = arith.constant 0 : i32
    %c0_i32_0 = arith.constant 0 : i32
    %c0_i32_1 = arith.constant 0 : i32
    return %arg1, %c0_i32, %c0_i32_0 : i32, i32, i32
  }
  func.func @transform_13(%arg0: i32, %arg1: i32) -> (i32, i32, i32) {
    %c0_i32 = arith.constant 0 : i32
    %c0_i32_0 = arith.constant 0 : i32
    %c0_i32_1 = arith.constant 0 : i32
    return %arg0, %c0_i32, %c0_i32_0 : i32, i32, i32
  }
}

</mosaic_0001>

<llo_original>
// kernel: tpu_custom_call.1
$region0: #{tpu_custom_call.1}
  #allocation0 [shape = 'u32[]', space=smem, size = 0x4, offset = 0x4, fixed_abs, tag = 'smem constant byte address 0x4 - core index']
  #allocation1 [shape = 'u32[144,128]{1,0:T(1,128)}', space=vmem, size = 0x12000, scoped, tag = 'internal scratch']
  #allocation2 [shape = 'f32[16,32]{1,0:T(8,128)}', space=vmem, size = 0x2000, scoped, tag = 'scratch operand']
  %s0 = inlined_call_operand.hbm [shape: f32[2,8,32], index: 0, kind: input, shape index: {}]
  %s1 = inlined_call_operand.vmem [shape: f32[2,1,32], index: 1, kind: input, shape index: {}]
  %s2 = inlined_call_operand.vmem [shape: f32[2,1,32], index: 2, kind: input, shape index: {}]
  %s3 = inlined_call_operand.vmem [shape: bf16[2,32,96], index: 3, kind: input, shape index: {}]
  %s4 = inlined_call_operand.vmem [shape: f32[2,1,96], index: 4, kind: input, shape index: {}]
  %s5 = inlined_call_operand.vmem [shape: bf16[2,32,32], index: 5, kind: input, shape index: {}]
  %s6 = inlined_call_operand.vmem [shape: f32[2,1,32], index: 6, kind: input, shape index: {}]
  %s7 = inlined_call_operand.hbm [shape: f32[2,1,32], index: 7, kind: input, shape index: {}]
  %s8 = inlined_call_operand.hbm [shape: f32[2,1,32], index: 8, kind: input, shape index: {}]
  %s9 = inlined_call_operand.vmem [shape: bf16[2,32,64], index: 9, kind: input, shape index: {}]
  %s10 = inlined_call_operand.hbm [shape: f32[2,1,64], index: 10, kind: input, shape index: {}]
  %s11 = inlined_call_operand.vmem [shape: bf16[2,64,32], index: 11, kind: input, shape index: {}]
  %s12 = inlined_call_operand.vmem [shape: f32[2,1,32], index: 12, kind: input, shape index: {}]
  %s13 = inlined_call_operand.hbm [shape: f32[2,8,32], index: 13, kind: output, shape index: {}]
  %s14 = sld [smem:[#allocation0]]
  $region109: #{tpu_custom_call.1} parent=0
    _
  %s16 = ssub.s32 1, %s14
  %s17 = scalar_select 0, %s16, %s14
  $region1: #{tpu_custom_call.1} parent=0
    #allocation3 [shape = 'u8[8192]{0}', space=vmem, size = 0x2000, scoped, tag = 'input window, operand 0, single buffered']
    #allocation4 [shape = 's32[2]{0}', space=sflag, size = 0x8, scoped, tag = 'scoped memory for tpu_custom_call.1']
    #allocation5 [shape = 's32[2]{0}', space=sflag, size = 0x8, scoped, tag = 'scoped memory for tpu_custom_call.1']
    #allocation6 [shape = 'u8[1024]{0}', space=vmem, size = 0x400, scoped, tag = 'input window, operand 7']
    #allocation7 [shape = 's32[2]{0}', space=sflag, size = 0x8, scoped, tag = 'scoped memory for tpu_custom_call.1']
    #allocation8 [shape = 'u8[1024]{0}', space=vmem, size = 0x400, scoped, tag = 'input window, operand 8']
    #allocation9 [shape = 'u8[1024]{0}', space=vmem, size = 0x400, scoped, tag = 'input window, operand 10']
    #allocation10 [shape = 's32[2]{0}', space=sflag, size = 0x8, scoped, tag = 'scoped memory for tpu_custom_call.1']
    #allocation11 [shape = 'u8[8192]{0}', space=vmem, size = 0x2000, scoped, tag = 'output window, operand 0, single buffered']
    %18 = vsyncpa [#allocation4], 0
    %19 = vsyncpa [#allocation7], 0
    %s20 = scalar_lea.sflag [#allocation7], 1
    %21 = vsyncpa %s20, 0
    %22 = vsyncpa [#allocation10], 0
    %s23 = scalar_lea.sflag [#allocation10], 1
    %24 = vsyncpa %s23, 0
    %25 = vsyncpa [#allocation5], 0
    loop: start=0, step=1, limit=4
    $region2: #{tpu_custom_call.1} parent=1 // loop_pre_header
      _
    $region3: #{tpu_custom_call.1} parent=1 // loop_header
      %s27 = sphi 0, %s31
      %p28 = scmp.ge.s32.totalorder %s27, 4
      %s34 = sphi 0, %s46
      %s35 = sphi 0, %s42
      %s36 = sphi 0, %s34
      %s37 = sphi 0, %s35
      %s38 = sphi 0, %s36
      %s39 = sphi 0, %s37
      %s49 = sphi 0, %s51
      %s52 = sphi 0, %s49
      %s53 = sphi 0, %s52
      %s69 = sphi 0, %s53
      %s75 = sphi 0, %s77
      %s78 = sphi 0, %s75
      %s79 = sphi 0, %s78
      %s95 = sphi 0, %s79
      %s101 = sphi 0, %s103
      %s104 = sphi 0, %s101
      %s105 = sphi 0, %s104
      %s121 = sphi 0, %s105
      %s127 = sphi 0, %s129
      %s130 = sphi 0, %s127
      %s131 = sphi 0, %s130
      %s147 = sphi 0, %s131
      %s153 = sphi 0, %s155
      %s156 = sphi 0, %s153
      %s157 = sphi 0, %s156
      %s173 = sphi 0, %s157
      %s179 = sphi 0, %s181
      %s182 = sphi 0, %s179
      %s183 = sphi 0, %s182
      %s199 = sphi 0, %s183
      %s205 = sphi 0, %s207
      %s208 = sphi 0, %s205
      %s209 = sphi 0, %s208
      %s225 = sphi 0, %s209
      %s231 = sphi 0, %s233
      %s234 = sphi 0, %s231
      %s235 = sphi 0, %s234
      %s251 = sphi 0, %s235
      %s257 = sphi 0, %s259
      %s260 = sphi 0, %s257
      %s261 = sphi 0, %s260
      %s277 = sphi 0, %s261
      %s283 = sphi 0, %s285
      %s286 = sphi 0, %s283
      %s287 = sphi 0, %s286
      %s303 = sphi 0, %s287
      %s309 = sphi 0, %s311
      %s312 = sphi 0, %s309
      %s313 = sphi 0, %s312
      %s329 = sphi 0, %s313
      %s335 = sphi 0, %s337
      %s338 = sphi 0, %s335
      %s339 = sphi 0, %s338
      %s355 = sphi 0, %s339
      %s361 = sphi 0, %s363
      %s364 = sphi 0, %s361
      %s365 = sphi 0, %s364
      %s381 = sphi 0, %s365
      %s387 = sphi 0, %s389
      %s390 = sphi 0, %s387
      %s391 = sphi 0, %s390
      %s407 = sphi 0, %s391
    $region4: #{tpu_custom_call.1} parent=1 // loop_header_branch
      %30 = sbr.rel (%p28) target = $region8
    $region5: #{tpu_custom_call.1} parent=1 // loop_body
      %s32 = ssub.s32 %s27, 1
      %s33 = ssub.s32 %s27, 2
      %s40 = sadd.s32 1, %s35
      %p41 = scmp.ge.s32.totalorder %s40, 2
      %s42 = scalar_select %p41, 0, %s40
      %s43 = sadd.s32 1, %s34
      %s44 = scalar_select %p41, %s43, %s34
      %p45 = scmp.ge.s32.totalorder %s44, 1
      %s46 = scalar_select %p45, 0, %s44
      %s47 = ssub.s32 %s34, %s46
      %p48 = scmp.eq.s32.totalorder %s47, 0
      %s50 = sadd.s32 %s49, 1
      %s51 = scalar_select %p48, %s49, %s50
      %p54 = pneg %p48
      %p55 = scmp.eq.s32.totalorder %s27, 1
      %p56 = por %p54, %p55
      %p57 = scmp.ne.s32.totalorder %s49, %s52
      %p58 = scmp.eq.s32.totalorder %s27, 0
      %p59 = por %p57, %p58
      %p60 = scmp.ne.s32.totalorder %s49, %s52
      %p61 = scmp.eq.s32.totalorder %s32, 1
      %p62 = por %p60, %p61
      %p63 = scmp.ne.s32.totalorder %s52, %s53
      %p64 = scmp.eq.s32.totalorder %s32, 0
      %p65 = por %p63, %p64
      %p66 = scmp.ne.s32.totalorder %s52, %s53
      %p67 = scmp.eq.s32.totalorder %s33, 1
      %p68 = por %p66, %p67
      %p70 = scmp.ne.s32.totalorder %s53, %s69
      %p71 = scmp.eq.s32.totalorder %s33, 0
      %p72 = por %p70, %p71
      %s73 = ssub.s32 %s35, %s42
      %p74 = scmp.eq.s32.totalorder %s73, 0
      %s76 = sadd.s32 %s75, 1
      %s77 = scalar_select %p74, %s75, %s76
      %p80 = pneg %p74
      %p81 = scmp.eq.s32.totalorder %s27, 1
      %p82 = por %p80, %p81
      %p83 = scmp.ne.s32.totalorder %s75, %s78
      %p84 = scmp.eq.s32.totalorder %s27, 0
      %p85 = por %p83, %p84
      %p86 = scmp.ne.s32.totalorder %s75, %s78
      %p87 = scmp.eq.s32.totalorder %s32, 1
      %p88 = por %p86, %p87
      %p89 = scmp.ne.s32.totalorder %s78, %s79
      %p90 = scmp.eq.s32.totalorder %s32, 0
      %p91 = por %p89, %p90
      %p92 = scmp.ne.s32.totalorder %s78, %s79
      %p93 = scmp.eq.s32.totalorder %s33, 1
      %p94 = por %p92, %p93
      %p96 = scmp.ne.s32.totalorder %s79, %s95
      %p97 = scmp.eq.s32.totalorder %s33, 0
      %p98 = por %p96, %p97
      %s99 = ssub.s32 %s35, %s42
      %p100 = scmp.eq.s32.totalorder %s99, 0
      %s102 = sadd.s32 %s101, 1
      %s103 = scalar_select %p100, %s101, %s102
      %p106 = pneg %p100
      %p107 = scmp.eq.s32.totalorder %s27, 1
      %p108 = por %p106, %p107
      %p109 = scmp.ne.s32.totalorder %s101, %s104
      %p110 = scmp.eq.s32.totalorder %s27, 0
      %p111 = por %p109, %p110
      %p112 = scmp.ne.s32.totalorder %s101, %s104
      %p113 = scmp.eq.s32.totalorder %s32, 1
      %p114 = por %p112, %p113
      %p115 = scmp.ne.s32.totalorder %s104, %s105
      %p116 = scmp.eq.s32.totalorder %s32, 0
      %p117 = por %p115, %p116
      %p118 = scmp.ne.s32.totalorder %s104, %s105
      %p119 = scmp.eq.s32.totalorder %s33, 1
      %p120 = por %p118, %p119
      %p122 = scmp.ne.s32.totalorder %s105, %s121
      %p123 = scmp.eq.s32.totalorder %s33, 0
      %p124 = por %p122, %p123
      %s125 = ssub.s32 %s35, %s42
      %p126 = scmp.eq.s32.totalorder %s125, 0
      %s128 = sadd.s32 %s127, 1
      %s129 = scalar_select %p126, %s127, %s128
      %p132 = pneg %p126
      %p133 = scmp.eq.s32.totalorder %s27, 1
      %p134 = por %p132, %p133
      %p135 = scmp.ne.s32.totalorder %s127, %s130
      %p136 = scmp.eq.s32.totalorder %s27, 0
      %p137 = por %p135, %p136
      %p138 = scmp.ne.s32.totalorder %s127, %s130
      %p139 = scmp.eq.s32.totalorder %s32, 1
      %p140 = por %p138, %p139
      %p141 = scmp.ne.s32.totalorder %s130, %s131
      %p142 = scmp.eq.s32.totalorder %s32, 0
      %p143 = por %p141, %p142
      %p144 = scmp.ne.s32.totalorder %s130, %s131
      %p145 = scmp.eq.s32.totalorder %s33, 1
      %p146 = por %p144, %p145
      %p148 = scmp.ne.s32.totalorder %s131, %s147
      %p149 = scmp.eq.s32.totalorder %s33, 0
      %p150 = por %p148, %p149
      %s151 = ssub.s32 %s35, %s42
      %p152 = scmp.eq.s32.totalorder %s151, 0
      %s154 = sadd.s32 %s153, 1
      %s155 = scalar_select %p152, %s153, %s154
      %p158 = pneg %p152
      %p159 = scmp.eq.s32.totalorder %s27, 1
      %p160 = por %p158, %p159
      %p161 = scmp.ne.s32.totalorder %s153, %s156
      %p162 = scmp.eq.s32.totalorder %s27, 0
      %p163 = por %p161, %p162
      %p164 = scmp.ne.s32.totalorder %s153, %s156
      %p165 = scmp.eq.s32.totalorder %s32, 1
      %p166 = por %p164, %p165
      %p167 = scmp.ne.s32.totalorder %s156, %s157
      %p168 = scmp.eq.s32.totalorder %s32, 0
      %p169 = por %p167, %p168
      %p170 = scmp.ne.s32.totalorder %s156, %s157
      %p171 = scmp.eq.s32.totalorder %s33, 1
      %p172 = por %p170, %p171
      %p174 = scmp.ne.s32.totalorder %s157, %s173
      %p175 = scmp.eq.s32.totalorder %s33, 0
      %p176 = por %p174, %p175
      %s177 = ssub.s32 %s35, %s42
      %p178 = scmp.eq.s32.totalorder %s177, 0
      %s180 = sadd.s32 %s179, 1
      %s181 = scalar_select %p178, %s179, %s180
      %p184 = pneg %p178
      %p185 = scmp.eq.s32.totalorder %s27, 1
      %p186 = por %p184, %p185
      %p187 = scmp.ne.s32.totalorder %s179, %s182
      %p188 = scmp.eq.s32.totalorder %s27, 0
      %p189 = por %p187, %p188
      %p190 = scmp.ne.s32.totalorder %s179, %s182
      %p191 = scmp.eq.s32.totalorder %s32, 1
      %p192 = por %p190, %p191
      %p193 = scmp.ne.s32.totalorder %s182, %s183
      %p194 = scmp.eq.s32.totalorder %s32, 0
      %p195 = por %p193, %p194
      %p196 = scmp.ne.s32.totalorder %s182, %s183
      %p197 = scmp.eq.s32.totalorder %s33, 1
      %p198 = por %p196, %p197
      %p200 = scmp.ne.s32.totalorder %s183, %s199
      %p201 = scmp.eq.s32.totalorder %s33, 0
      %p202 = por %p200, %p201
      %s203 = ssub.s32 %s35, %s42
      %p204 = scmp.eq.s32.totalorder %s203, 0
      %s206 = sadd.s32 %s205, 1
      %s207 = scalar_select %p204, %s205, %s206
      %p210 = pneg %p204
      %p211 = scmp.eq.s32.totalorder %s27, 1
      %p212 = por %p210, %p211
      %p213 = scmp.ne.s32.totalorder %s205, %s208
      %p214 = scmp.eq.s32.totalorder %s27, 0
      %p215 = por %p213, %p214
      %p216 = scmp.ne.s32.totalorder %s205, %s208
      %p217 = scmp.eq.s32.totalorder %s32, 1
      %p218 = por %p216, %p217
      %p219 = scmp.ne.s32.totalorder %s208, %s209
      %p220 = scmp.eq.s32.totalorder %s32, 0
      %p221 = por %p219, %p220
      %p222 = scmp.ne.s32.totalorder %s208, %s209
      %p223 = scmp.eq.s32.totalorder %s33, 1
      %p224 = por %p222, %p223
      %p226 = scmp.ne.s32.totalorder %s209, %s225
      %p227 = scmp.eq.s32.totalorder %s33, 0
      %p228 = por %p226, %p227
      %s229 = ssub.s32 %s35, %s42
      %p230 = scmp.eq.s32.totalorder %s229, 0
      %s232 = sadd.s32 %s231, 1
      %s233 = scalar_select %p230, %s231, %s232
      %p236 = pneg %p230
      %p237 = scmp.eq.s32.totalorder %s27, 1
      %p238 = por %p236, %p237
      %p239 = scmp.ne.s32.totalorder %s231, %s234
      %p240 = scmp.eq.s32.totalorder %s27, 0
      %p241 = por %p239, %p240
      %p242 = scmp.ne.s32.totalorder %s231, %s234
      %p243 = scmp.eq.s32.totalorder %s32, 1
      %p244 = por %p242, %p243
      %p245 = scmp.ne.s32.totalorder %s234, %s235
      %p246 = scmp.eq.s32.totalorder %s32, 0
      %p247 = por %p245, %p246
      %p248 = scmp.ne.s32.totalorder %s234, %s235
      %p249 = scmp.eq.s32.totalorder %s33, 1
      %p250 = por %p248, %p249
      %p252 = scmp.ne.s32.totalorder %s235, %s251
      %p253 = scmp.eq.s32.totalorder %s33, 0
      %p254 = por %p252, %p253
      %s255 = ssub.s32 %s35, %s42
      %p256 = scmp.eq.s32.totalorder %s255, 0
      %s258 = sadd.s32 %s257, 1
      %s259 = scalar_select %p256, %s257, %s258
      %p262 = pneg %p256
      %p263 = scmp.eq.s32.totalorder %s27, 1
      %p264 = por %p262, %p263
      %p265 = scmp.ne.s32.totalorder %s257, %s260
      %p266 = scmp.eq.s32.totalorder %s27, 0
      %p267 = por %p265, %p266
      %p268 = scmp.ne.s32.totalorder %s257, %s260
      %p269 = scmp.eq.s32.totalorder %s32, 1
      %p270 = por %p268, %p269
      %p271 = scmp.ne.s32.totalorder %s260, %s261
      %p272 = scmp.eq.s32.totalorder %s32, 0
      %p273 = por %p271, %p272
      %p274 = scmp.ne.s32.totalorder %s260, %s261
      %p275 = scmp.eq.s32.totalorder %s33, 1
      %p276 = por %p274, %p275
      %p278 = scmp.ne.s32.totalorder %s261, %s277
      %p279 = scmp.eq.s32.totalorder %s33, 0
      %p280 = por %p278, %p279
      %s281 = ssub.s32 %s35, %s42
      %p282 = scmp.eq.s32.totalorder %s281, 0
      %s284 = sadd.s32 %s283, 1
      %s285 = scalar_select %p282, %s283, %s284
      %p288 = pneg %p282
      %p289 = scmp.eq.s32.totalorder %s27, 1
      %p290 = por %p288, %p289
      %p291 = scmp.ne.s32.totalorder %s283, %s286
      %p292 = scmp.eq.s32.totalorder %s27, 0
      %p293 = por %p291, %p292
      %p294 = scmp.ne.s32.totalorder %s283, %s286
      %p295 = scmp.eq.s32.totalorder %s32, 1
      %p296 = por %p294, %p295
      %p297 = scmp.ne.s32.totalorder %s286, %s287
      %p298 = scmp.eq.s32.totalorder %s32, 0
      %p299 = por %p297, %p298
      %p300 = scmp.ne.s32.totalorder %s286, %s287
      %p301 = scmp.eq.s32.totalorder %s33, 1
      %p302 = por %p300, %p301
      %p304 = scmp.ne.s32.totalorder %s287, %s303
      %p305 = scmp.eq.s32.totalorder %s33, 0
      %p306 = por %p304, %p305
      %s307 = ssub.s32 %s35, %s42
      %p308 = scmp.eq.s32.totalorder %s307, 0
      %s310 = sadd.s32 %s309, 1
      %s311 = scalar_select %p308, %s309, %s310
      %p314 = pneg %p308
      %p315 = scmp.eq.s32.totalorder %s27, 1
      %p316 = por %p314, %p315
      %p317 = scmp.ne.s32.totalorder %s309, %s312
      %p318 = scmp.eq.s32.totalorder %s27, 0
      %p319 = por %p317, %p318
      %p320 = scmp.ne.s32.totalorder %s309, %s312
      %p321 = scmp.eq.s32.totalorder %s32, 1
      %p322 = por %p320, %p321
      %p323 = scmp.ne.s32.totalorder %s312, %s313
      %p324 = scmp.eq.s32.totalorder %s32, 0
      %p325 = por %p323, %p324
      %p326 = scmp.ne.s32.totalorder %s312, %s313
      %p327 = scmp.eq.s32.totalorder %s33, 1
      %p328 = por %p326, %p327
      %p330 = scmp.ne.s32.totalorder %s313, %s329
      %p331 = scmp.eq.s32.totalorder %s33, 0
      %p332 = por %p330, %p331
      %s333 = ssub.s32 %s35, %s42
      %p334 = scmp.eq.s32.totalorder %s333, 0
      %s336 = sadd.s32 %s335, 1
      %s337 = scalar_select %p334, %s335, %s336
      %p340 = pneg %p334
      %p341 = scmp.eq.s32.totalorder %s27, 1
      %p342 = por %p340, %p341
      %p343 = scmp.ne.s32.totalorder %s335, %s338
      %p344 = scmp.eq.s32.totalorder %s27, 0
      %p345 = por %p343, %p344
      %p346 = scmp.ne.s32.totalorder %s335, %s338
      %p347 = scmp.eq.s32.totalorder %s32, 1
      %p348 = por %p346, %p347
      %p349 = scmp.ne.s32.totalorder %s338, %s339
      %p350 = scmp.eq.s32.totalorder %s32, 0
      %p351 = por %p349, %p350
      %p352 = scmp.ne.s32.totalorder %s338, %s339
      %p353 = scmp.eq.s32.totalorder %s33, 1
      %p354 = por %p352, %p353
      %p356 = scmp.ne.s32.totalorder %s339, %s355
      %p357 = scmp.eq.s32.totalorder %s33, 0
      %p358 = por %p356, %p357
      %s359 = ssub.s32 %s35, %s42
      %p360 = scmp.eq.s32.totalorder %s359, 0
      %s362 = sadd.s32 %s361, 1
      %s363 = scalar_select %p360, %s361, %s362
      %p366 = pneg %p360
      %p367 = scmp.eq.s32.totalorder %s27, 1
      %p368 = por %p366, %p367
      %p369 = scmp.ne.s32.totalorder %s361, %s364
      %p370 = scmp.eq.s32.totalorder %s27, 0
      %p371 = por %p369, %p370
      %p372 = scmp.ne.s32.totalorder %s361, %s364
      %p373 = scmp.eq.s32.totalorder %s32, 1
      %p374 = por %p372, %p373
      %p375 = scmp.ne.s32.totalorder %s364, %s365
      %p376 = scmp.eq.s32.totalorder %s32, 0
      %p377 = por %p375, %p376
      %p378 = scmp.ne.s32.totalorder %s364, %s365
      %p379 = scmp.eq.s32.totalorder %s33, 1
      %p380 = por %p378, %p379
      %p382 = scmp.ne.s32.totalorder %s365, %s381
      %p383 = scmp.eq.s32.totalorder %s33, 0
      %p384 = por %p382, %p383
      %s385 = ssub.s32 %s34, %s46
      %p386 = scmp.eq.s32.totalorder %s385, 0
      %s388 = sadd.s32 %s387, 1
      %s389 = scalar_select %p386, %s387, %s388
      %p392 = pneg %p386
      %p393 = scmp.eq.s32.totalorder %s27, 1
      %p394 = por %p392, %p393
      %p395 = scmp.ne.s32.totalorder %s387, %s390
      %p396 = scmp.eq.s32.totalorder %s27, 0
      %p397 = por %p395, %p396
      %p398 = scmp.ne.s32.totalorder %s387, %s390
      %p399 = scmp.eq.s32.totalorder %s32, 1
      %p400 = por %p398, %p399
      %p401 = scmp.ne.s32.totalorder %s390, %s391
      %p402 = scmp.eq.s32.totalorder %s32, 0
      %p403 = por %p401, %p402
      %p404 = scmp.ne.s32.totalorder %s390, %s391
      %p405 = scmp.eq.s32.totalorder %s33, 1
      %p406 = por %p404, %p405
      %p408 = scmp.ne.s32.totalorder %s391, %s407
      %p409 = scmp.eq.s32.totalorder %s33, 0
      %p410 = por %p408, %p409
      %p411 = scmp.le.s32.totalorder 1, %s27
      %p412 = scmp.lt.s32.totalorder %s27, 3
      %p413 = pnand %p411, %p412
      %p414 = pneg %p413
      // Predicated region
      $region9: #{tpu_custom_call.1} parent=5 // pred_check
        _
      $region10: #{tpu_custom_call.1} parent=5 // pred_check_branch
        %416 = sbr.rel (%p413) target = $region12
      $region11: #{tpu_custom_call.1} parent=5 // pred_region
        %s417 = ssub.s32 %s27, 1
        // Predicated region
        $region13: #{tpu_custom_call.1} parent=11 // pred_check
          %p418 = pneg %p65
        $region14: #{tpu_custom_call.1} parent=11 // pred_check_branch
          %420 = sbr.rel (%p418) target = $region16
        $region15: #{tpu_custom_call.1} parent=11 // pred_region
          %s421 = smul.u32 2, %s36
          %s423 = ssub.s32 256, 256
          %424 = vsyncadd [#allocation4], %s423
          %s425 = smul.addr %s421, 128
          %s426 = scalar_lea.hbm %s0, %s425
          %s427 = sshll.u32 [#allocation3], 4
          %s428 = int_to_ptr.vmem [resolvable:$true] %s427
          %433 = dma.hbm_to_vmem [thread:$0]  %s426, 256, %s428, [#allocation4], 128, 128, 8
        $region16: #{tpu_custom_call.1} parent=11 // pred_fallthru
          _
      $region12: #{tpu_custom_call.1} parent=5 // pred_fallthru
        _
      %p434 = scmp.lt.s32.totalorder %s27, 2
      // Predicated region
      $region17: #{tpu_custom_call.1} parent=5 // pred_check
        %p435 = pneg %p434
      $region18: #{tpu_custom_call.1} parent=5 // pred_check_branch
        %437 = sbr.rel (%p435) target = $region20
      $region19: #{tpu_custom_call.1} parent=5 // pred_region
        // Predicated region
        $region21: #{tpu_custom_call.1} parent=19 // pred_check
          %p438 = pneg %p85
        $region22: #{tpu_custom_call.1} parent=19 // pred_check_branch
          %440 = sbr.rel (%p438) target = $region24
        $region23: #{tpu_custom_call.1} parent=19 // pred_region
          %p441 = scmp.lt.s32.totalorder %s35, 1
          %s442 = scalar_select %p441, %s35, 1
          %s443 = scalar_lea.vmem %s1, %s442
        $region24: #{tpu_custom_call.1} parent=19 // pred_fallthru
          _
        // Predicated region
        $region25: #{tpu_custom_call.1} parent=19 // pred_check
          %p444 = pneg %p111
        $region26: #{tpu_custom_call.1} parent=19 // pred_check_branch
          %446 = sbr.rel (%p444) target = $region28
        $region27: #{tpu_custom_call.1} parent=19 // pred_region
          %p447 = scmp.lt.s32.totalorder %s35, 1
          %s448 = scalar_select %p447, %s35, 1
          %s449 = scalar_lea.vmem %s2, %s448
        $region28: #{tpu_custom_call.1} parent=19 // pred_fallthru
          _
        // Predicated region
        $region29: #{tpu_custom_call.1} parent=19 // pred_check
          %p450 = pneg %p137
        $region30: #{tpu_custom_call.1} parent=19 // pred_check_branch
          %452 = sbr.rel (%p450) target = $region32
        $region31: #{tpu_custom_call.1} parent=19 // pred_region
          %p453 = scmp.lt.s32.totalorder %s35, 1
          %s454 = scalar_select %p453, %s35, 1
          %s455 = smul.addr %s454, 4
          %s456 = smul.addr %s455, 4
          %s457 = scalar_lea.vmem %s3, %s456
        $region32: #{tpu_custom_call.1} parent=19 // pred_fallthru
          _
        // Predicated region
        $region33: #{tpu_custom_call.1} parent=19 // pred_check
          %p458 = pneg %p163
        $region34: #{tpu_custom_call.1} parent=19 // pred_check_branch
          %460 = sbr.rel (%p458) target = $region36
        $region35: #{tpu_custom_call.1} parent=19 // pred_region
          %p461 = scmp.lt.s32.totalorder %s35, 1
          %s462 = scalar_select %p461, %s35, 1
          %s463 = scalar_lea.vmem %s4, %s462
        $region36: #{tpu_custom_call.1} parent=19 // pred_fallthru
          _
        // Predicated region
        $region37: #{tpu_custom_call.1} parent=19 // pred_check
          %p464 = pneg %p189
        $region38: #{tpu_custom_call.1} parent=19 // pred_check_branch
          %466 = sbr.rel (%p464) target = $region40
        $region39: #{tpu_custom_call.1} parent=19 // pred_region
          %p467 = scmp.lt.s32.totalorder %s35, 1
          %s468 = scalar_select %p467, %s35, 1
          %s469 = smul.addr %s468, 4
          %s470 = smul.addr %s469, 4
          %s471 = scalar_lea.vmem %s5, %s470
        $region40: #{tpu_custom_call.1} parent=19 // pred_fallthru
          _
        // Predicated region
        $region41: #{tpu_custom_call.1} parent=19 // pred_check
          %p472 = pneg %p215
        $region42: #{tpu_custom_call.1} parent=19 // pred_check_branch
          %474 = sbr.rel (%p472) target = $region44
        $region43: #{tpu_custom_call.1} parent=19 // pred_region
          %p475 = scmp.lt.s32.totalorder %s35, 1
          %s476 = scalar_select %p475, %s35, 1
          %s477 = scalar_lea.vmem %s6, %s476
        $region44: #{tpu_custom_call.1} parent=19 // pred_fallthru
          _
        // Predicated region
        $region45: #{tpu_custom_call.1} parent=19 // pred_check
          %p478 = pneg %p241
        $region46: #{tpu_custom_call.1} parent=19 // pred_check_branch
          %480 = sbr.rel (%p478) target = $region48
        $region47: #{tpu_custom_call.1} parent=19 // pred_region
          %s481 = sand.u32 %s27, 1
          %s482 = scalar_lea.sflag [#allocation7], %s481
          %s483 = sand.u32 %s231, 1
          %s484 = scalar_lea.vmem [#allocation6], %s483
          %s486 = ssub.s32 16, 16
          %487 = vsyncadd %s482, %s486
          %s488 = smul.addr %s35, 16
          %s489 = scalar_lea.hbm %s7, %s488
          %s491 = sshll.u32 %s484, 4
          %s492 = int_to_ptr.vmem [resolvable:$true] %s491
          %494 = dma.hbm_to_vmem [thread:$0]  %s489, 16, %s492, %s482
        $region48: #{tpu_custom_call.1} parent=19 // pred_fallthru
          _
        // Predicated region
        $region49: #{tpu_custom_call.1} parent=19 // pred_check
          %p495 = pneg %p267
        $region50: #{tpu_custom_call.1} parent=19 // pred_check_branch
          %497 = sbr.rel (%p495) target = $region52
        $region51: #{tpu_custom_call.1} parent=19 // pred_region
          %s498 = sand.u32 %s27, 1
          %s499 = scalar_lea.sflag [#allocation7], %s498
          %s500 = sand.u32 %s257, 1
          %s501 = scalar_lea.vmem [#allocation8], %s500
          %s503 = ssub.s32 16, 16
          %504 = vsyncadd %s499, %s503
          %s505 = smul.addr %s35, 16
          %s506 = scalar_lea.hbm %s8, %s505
          %s508 = sshll.u32 %s501, 4
          %s509 = int_to_ptr.vmem [resolvable:$true] %s508
          %511 = dma.hbm_to_vmem [thread:$0]  %s506, 16, %s509, %s499
        $region52: #{tpu_custom_call.1} parent=19 // pred_fallthru
          _
        // Predicated region
        $region53: #{tpu_custom_call.1} parent=19 // pred_check
          %p512 = pneg %p293
        $region54: #{tpu_custom_call.1} parent=19 // pred_check_branch
          %514 = sbr.rel (%p512) target = $region56
        $region55: #{tpu_custom_call.1} parent=19 // pred_region
          %p515 = scmp.lt.s32.totalorder %s35, 1
          %s516 = scalar_select %p515, %s35, 1
          %s517 = smul.addr %s516, 4
          %s518 = smul.addr %s517, 4
          %s519 = scalar_lea.vmem %s9, %s518
        $region56: #{tpu_custom_call.1} parent=19 // pred_fallthru
          _
        // Predicated region
        $region57: #{tpu_custom_call.1} parent=19 // pred_check
          %p520 = pneg %p319
        $region58: #{tpu_custom_call.1} parent=19 // pred_check_branch
          %522 = sbr.rel (%p520) target = $region60
        $region59: #{tpu_custom_call.1} parent=19 // pred_region
          %s523 = sand.u32 %s309, 1
          %s524 = scalar_lea.sflag [#allocation10], %s523
          %s525 = sand.u32 %s309, 1
          %s526 = scalar_lea.vmem [#allocation9], %s525
          %s528 = ssub.s32 16, 16
          %529 = vsyncadd %s524, %s528
          %s530 = smul.addr %s35, 16
          %s531 = scalar_lea.hbm %s10, %s530
          %s533 = sshll.u32 %s526, 4
          %s534 = int_to_ptr.vmem [resolvable:$true] %s533
          %536 = dma.hbm_to_vmem [thread:$0]  %s531, 16, %s534, %s524
        $region60: #{tpu_custom_call.1} parent=19 // pred_fallthru
          _
        // Predicated region
        $region61: #{tpu_custom_call.1} parent=19 // pred_check
          %p537 = pneg %p345
        $region62: #{tpu_custom_call.1} parent=19 // pred_check_branch
          %539 = sbr.rel (%p537) target = $region64
        $region63: #{tpu_custom_call.1} parent=19 // pred_region
          %p540 = scmp.lt.s32.totalorder %s35, 1
          %s541 = scalar_select %p540, %s35, 1
          %s542 = smul.addr %s541, 8
          %s543 = smul.addr %s542, 4
          %s544 = scalar_lea.vmem %s11, %s543
        $region64: #{tpu_custom_call.1} parent=19 // pred_fallthru
          _
        // Predicated region
        $region65: #{tpu_custom_call.1} parent=19 // pred_check
          %p545 = pneg %p371
        $region66: #{tpu_custom_call.1} parent=19 // pred_check_branch
          %547 = sbr.rel (%p545) target = $region68
        $region67: #{tpu_custom_call.1} parent=19 // pred_region
          %p548 = scmp.lt.s32.totalorder %s35, 1
          %s549 = scalar_select %p548, %s35, 1
          %s550 = scalar_lea.vmem %s12, %s549
        $region68: #{tpu_custom_call.1} parent=19 // pred_fallthru
          _
      $region20: #{tpu_custom_call.1} parent=5 // pred_fallthru
        _
      %p551 = scmp.le.s32.totalorder 1, %s27
      %p552 = scmp.lt.s32.totalorder %s27, 3
      %p553 = pnand %p551, %p552
      %p554 = pneg %p553
      // Predicated region
      $region69: #{tpu_custom_call.1} parent=5 // pred_check
        _
      $region70: #{tpu_custom_call.1} parent=5 // pred_check_branch
        %556 = sbr.rel (%p553) target = $region72
      $region71: #{tpu_custom_call.1} parent=5 // pred_region
        %s557 = ssub.s32 %s27, 1
        // Predicated region
        $region73: #{tpu_custom_call.1} parent=71 // pred_check
          %p558 = pneg %p65
        $region74: #{tpu_custom_call.1} parent=71 // pred_check_branch
          %560 = sbr.rel (%p558) target = $region76
        $region75: #{tpu_custom_call.1} parent=71 // pred_region
          %561 = dma.done [#allocation4], 256
        $region76: #{tpu_custom_call.1} parent=71 // pred_fallthru
          _
        %s562 = sand.u32 %s32, 1
        %s563 = scalar_lea.sflag [#allocation7], %s562
        %s564 = sand.u32 %s234, 1
        %s565 = scalar_lea.vmem [#allocation6], %s564
        // Predicated region
        $region77: #{tpu_custom_call.1} parent=71 // pred_check
          %p566 = pneg %p247
        $region78: #{tpu_custom_call.1} parent=71 // pred_check_branch
          %568 = sbr.rel (%p566) target = $region80
        $region79: #{tpu_custom_call.1} parent=71 // pred_region
          %569 = dma.done %s563, 16
        $region80: #{tpu_custom_call.1} parent=71 // pred_fallthru
          _
        %s570 = sand.u32 %s32, 1
        %s571 = scalar_lea.sflag [#allocation7], %s570
        %s572 = sand.u32 %s260, 1
        %s573 = scalar_lea.vmem [#allocation8], %s572
        // Predicated region
        $region81: #{tpu_custom_call.1} parent=71 // pred_check
          %p574 = pneg %p273
        $region82: #{tpu_custom_call.1} parent=71 // pred_check_branch
          %576 = sbr.rel (%p574) target = $region84
        $region83: #{tpu_custom_call.1} parent=71 // pred_region
          %577 = dma.done %s571, 16
        $region84: #{tpu_custom_call.1} parent=71 // pred_fallthru
          _
        %s578 = sand.u32 %s312, 1
        %s579 = scalar_lea.sflag [#allocation10], %s578
        %s580 = sand.u32 %s312, 1
        %s581 = scalar_lea.vmem [#allocation9], %s580
        // Predicated region
        $region85: #{tpu_custom_call.1} parent=71 // pred_check
          %p582 = pneg %p325
        $region86: #{tpu_custom_call.1} parent=71 // pred_check_branch
          %584 = sbr.rel (%p582) target = $region88
        $region87: #{tpu_custom_call.1} parent=71 // pred_region
          %585 = dma.done %s579, 16
        $region88: #{tpu_custom_call.1} parent=71 // pred_fallthru
          _
        %p586 = pneg %p65
        %p587 = pneg %p62
        %p588 = scmp.lt.s32.totalorder %s37, 1
        %s589 = scalar_select %p588, %s37, 1
        %s590 = scalar_lea.vmem %s1, %s589
        %p591 = pneg %p91
        %p592 = pneg %p88
        %p593 = scmp.lt.s32.totalorder %s37, 1
        %s594 = scalar_select %p593, %s37, 1
        %s595 = scalar_lea.vmem %s2, %s594
        %p596 = pneg %p117
        %p597 = pneg %p114
        %p598 = scmp.lt.s32.totalorder %s37, 1
        %s599 = scalar_select %p598, %s37, 1
        %s600 = smul.addr %s599, 4
        %s601 = smul.addr %s600, 4
        %s602 = scalar_lea.vmem %s3, %s601
        %p603 = pneg %p143
        %p604 = pneg %p140
        %p605 = scmp.lt.s32.totalorder %s37, 1
        %s606 = scalar_select %p605, %s37, 1
        %s607 = scalar_lea.vmem %s4, %s606
        %p608 = pneg %p169
        %p609 = pneg %p166
        %p610 = scmp.lt.s32.totalorder %s37, 1
        %s611 = scalar_select %p610, %s37, 1
        %s612 = smul.addr %s611, 4
        %s613 = smul.addr %s612, 4
        %s614 = scalar_lea.vmem %s5, %s613
        %p615 = pneg %p195
        %p616 = pneg %p192
        %p617 = scmp.lt.s32.totalorder %s37, 1
        %s618 = scalar_select %p617, %s37, 1
        %s619 = scalar_lea.vmem %s6, %s618
        %p620 = pneg %p221
        %p621 = pneg %p218
        %s622 = sand.u32 %s32, 1
        %s623 = scalar_lea.sflag [#allocation7], %s622
        %s624 = sand.u32 %s234, 1
        %s625 = scalar_lea.vmem [#allocation6], %s624
        %p626 = pneg %p247
        %p627 = pneg %p244
        %s628 = sand.u32 %s32, 1
        %s629 = scalar_lea.sflag [#allocation7], %s628
        %s630 = sand.u32 %s260, 1
        %s631 = scalar_lea.vmem [#allocation8], %s630
        %p632 = pneg %p273
        %p633 = pneg %p270
        %p634 = scmp.lt.s32.totalorder %s37, 1
        %s635 = scalar_select %p634, %s37, 1
        %s636 = smul.addr %s635, 4
        %s637 = smul.addr %s636, 4
        %s638 = scalar_lea.vmem %s9, %s637
        %p639 = pneg %p299
        %p640 = pneg %p296
        %s641 = sand.u32 %s312, 1
        %s642 = scalar_lea.sflag [#allocation10], %s641
        %s643 = sand.u32 %s312, 1
        %s644 = scalar_lea.vmem [#allocation9], %s643
        %p645 = pneg %p325
        %p646 = pneg %p322
        %p647 = scmp.lt.s32.totalorder %s37, 1
        %s648 = scalar_select %p647, %s37, 1
        %s649 = smul.addr %s648, 8
        %s650 = smul.addr %s649, 4
        %s651 = scalar_lea.vmem %s11, %s650
        %p652 = pneg %p351
        %p653 = pneg %p348
        %p654 = scmp.lt.s32.totalorder %s37, 1
        %s655 = scalar_select %p654, %s37, 1
        %s656 = scalar_lea.vmem %s12, %s655
        %p657 = pneg %p377
        %p658 = pneg %p374
        %p659 = pneg %p403
        %p660 = pneg %p400
        %s661 = smul.u32 2, %s36
        %p662 = scmp.lt.s32.totalorder %s37, 1
        %s663 = scalar_select %p662, %s37, 1
        %s664 = scalar_lea.vmem %s1, %s663
        %p665 = scmp.lt.s32.totalorder %s37, 1
        %s666 = scalar_select %p665, %s37, 1
        %s667 = scalar_lea.vmem %s2, %s666
        %p668 = scmp.lt.s32.totalorder %s37, 1
        %s669 = scalar_select %p668, %s37, 1
        %s670 = smul.addr %s669, 4
        %s671 = smul.addr %s670, 4
        %s672 = scalar_lea.vmem %s3, %s671
        %p673 = scmp.lt.s32.totalorder %s37, 1
        %s674 = scalar_select %p673, %s37, 1
        %s675 = scalar_lea.vmem %s4, %s674
        %p676 = scmp.lt.s32.totalorder %s37, 1
        %s677 = scalar_select %p676, %s37, 1
        %s678 = smul.addr %s677, 4
        %s679 = smul.addr %s678, 4
        %s680 = scalar_lea.vmem %s5, %s679
        %p681 = scmp.lt.s32.totalorder %s37, 1
        %s682 = scalar_select %p681, %s37, 1
        %s683 = scalar_lea.vmem %s6, %s682
        %p684 = scmp.lt.s32.totalorder %s37, 1
        %s685 = scalar_select %p684, %s37, 1
        %s686 = smul.addr %s685, 4
        %s687 = smul.addr %s686, 4
        %s688 = scalar_lea.vmem %s9, %s687
        %p689 = scmp.lt.s32.totalorder %s37, 1
        %s690 = scalar_select %p689, %s37, 1
        %s691 = smul.addr %s690, 8
        %s692 = smul.addr %s691, 4
        %s693 = scalar_lea.vmem %s11, %s692
        %p694 = scmp.lt.s32.totalorder %s37, 1
        %s695 = scalar_select %p694, %s37, 1
        %s696 = scalar_lea.vmem %s12, %s695
        %s697 = smul.u32 2, %s36
        %p699 = scmp.eq.s32.totalorder %s37, 0
        // Predicated region
        $region89: #{tpu_custom_call.1} parent=71 // pred_check
          %p700 = pneg %p699
        $region90: #{tpu_custom_call.1} parent=71 // pred_check_branch
          %702 = sbr.rel (%p700) target = $region92
        $region91: #{tpu_custom_call.1} parent=71 // pred_region
          %v703 = vld [vmem:[#allocation3] sm:$0xff]
          %v704 = vld [vmem:[#allocation3 + $0x8] sm:$0xff]
          %vm705 = vcmask 261120
          %706 = vst.msk [vmem:[#allocation2] sm:$0xff] %vm705, %v703
          %707 = vst.msk [vmem:[#allocation2 + $0x8] sm:$0xff] %vm705, %v704
        $region92: #{tpu_custom_call.1} parent=71 // pred_fallthru
          _
        %v708 = vld [vmem:[#allocation2] sm:$0xff]
        %v709 = vld [vmem:[#allocation2 + $0x8] sm:$0xff]
        %v710 = vld [vmem:[%s664] sm:$0x1]
        %v711 = vld [vmem:[%s667] sm:$0x1]
        %vm712 = vcmask 261120
        %v713 = vsel %vm712, %v708, 0.0
        %714 = vadd.xlane.f32.xlu0 %v713
        %v715 = vpop.xlane.xlu0 %714
        %v716 = vsel %vm712, %v709, 0.0
        %717 = vadd.xlane.f32.xlu0 %v716
        %v718 = vpop.xlane.xlu0 %717
        %v719 = vrcp.pop 32.0
        %v720 = vmul.f32 %v715, %v719
        %v721 = vmul.f32 %v718, %v719
        %v722 = vsub.f32 %v708, %v720
        %v723 = vsub.f32 %v709, %v721
        %v724 = vmul.f32 %v722, %v722
        %v725 = vmul.f32 %v723, %v723
        %v726 = vsel %vm712, %v724, 0.0
        %727 = vadd.xlane.f32.xlu0 %v726
        %v728 = vpop.xlane.xlu0 %727
        %v729 = vsel %vm712, %v725, 0.0
        %730 = vadd.xlane.f32.xlu0 %v729
        %v731 = vpop.xlane.xlu0 %730
        %v732 = vmul.f32 %v728, %v719
        %v733 = vmul.f32 %v731, %v719
        %v734 = vadd.f32 %v732, 1e-05
        %v735 = vadd.f32 %v733, 1e-05
        %v736 = vrsqrt.pop %v734
        %v737 = vrsqrt.pop %v735
        %v738 = vmul.f32 %v722, %v736
        %v739 = vmul.f32 %v723, %v737
        %v741 = vlaneseq
        %v742 = vshrl.u32 %v741, 7
        %v743 = vsub.s32 0, %v742
        %v744 = vrot.slane %v710, %v743
        %v746 = vmul.f32 %v738, %v744
        %v747 = vmul.f32 %v739, %v744
        %v749 = vlaneseq
        %v750 = vshrl.u32 %v749, 7
        %v751 = vsub.s32 0, %v750
        %v752 = vrot.slane %v711, %v751
        %v754 = vadd.f32 %v746, %v752
        %v755 = vadd.f32 %v747, %v752
        %v756 = vpack.c.bf16 %v755, %v754
        %v757 = vld [vmem:[%s672] sm:$0xf]
        %v758 = vld [vmem:[%s672 + $0x4] sm:$0xf]
        %v759 = vld [vmem:[%s672 + $0x8] sm:$0xf]
        %v760 = vld [vmem:[%s672 + $0xc] sm:$0xf]
        %v761 = vld [vmem:[%s675] sm:$0x1]
        %v763 = vlaneseq
        %v764 = vshrl.u32 %v763, 7
        %v765 = vsub.s32 0, %v764
        %v766 = vrot.slane %v761, %v765
        %v772 = vunpack.c.l.b16 %v757
        %v773 = vunpack.c.l.b16 %v758
        %v774 = vunpack.c.l.b16 %v759
        %v775 = vunpack.c.l.b16 %v760
        %v776 = vpack.c.b16 %v773, %v772
        %v777 = vpack.c.b16 %v775, %v774
        %v781 = vsel %vm712, %v756, 0
        %783 = vmatprep.subr.bf16.mxu0 0
        %784 = vmatpush1.bf16.msra.mxu0 %v776
        %785 = vmatprep.subr.bf16.mxu0 0
        %786 = vmatpush1.bf16.msra.mxu0 %v777
        %787 = vmatprep.subr.bf16.mxu0 0
        %788 = vmatpush1.bf16.msra.mxu0 0
        %789 = vmatprep.subr.bf16.mxu0 0
        %790 = vmatpush1.bf16.msra.mxu0 0
        %791 = vmatprep.subr.bf16.mxu0 0
        %792 = vmatpush1.bf16.msra.mxu0 0
        %793 = vmatprep.subr.bf16.mxu0 0
        %794 = vmatpush1.bf16.msra.mxu0 0
        %795 = vmatprep.subr.bf16.mxu0 0
        %796 = vmatpush1.bf16.msra.mxu0 0
        %797 = vmatprep.subr.bf16.mxu0 0
        %798 = vmatpush1.bf16.msra.mxu0 0
        %799 = vmatprep.subr.bf16.mxu0 0
        %800 = vmatpush1.bf16.msra.mxu0 0
        %801 = vmatprep.subr.bf16.mxu0 0
        %802 = vmatpush1.bf16.msra.mxu0 0
        %803 = vmatprep.subr.bf16.mxu0 0
        %804 = vmatpush1.bf16.msra.mxu0 0
        %805 = vmatprep.subr.bf16.mxu0 0
        %806 = vmatpush1.bf16.msra.mxu0 0
        %807 = vmatprep.subr.bf16.mxu0 0
        %808 = vmatpush1.bf16.msra.mxu0 0
        %809 = vmatprep.subr.bf16.mxu0 0
        %810 = vmatpush1.bf16.msra.mxu0 0
        %811 = vmatprep.subr.bf16.mxu0 0
        %812 = vmatpush1.bf16.msra.mxu0 0
        %813 = vmatprep.subr.bf16.mxu0 0
        %814 = vmatpush1.bf16.msra.mxu0 0
        %815 = vmatprep.mubr.bf16.mxu0 0
        %816 = vmatmul.mubr.bf16.gmra.mrb[0].mxu0 %v781
        %v817 = vpop.f32.mrb[0].mxu0
        %v818 = vadd.f32 %v766, %v817
        %v819 = vpop.f32.mrb[0].mxu0
        %v820 = vpop.f32.mrb[0].mxu0
        %v821 = vadd.f32 %v766, %v820
        %v822 = vpop.f32.mrb[0].mxu0
        %823 = vdwg.mxu0
        %v824 = vpack.c.bf16 %v818, %v818
        %v825 = vpack.c.bf16 %v821, %v821
        %827 = vrot.lane.b32.xlu0 %v824, 96
        %v828 = vpop.permute.xlu0 %827
        %vm829 = vcmask 64512
        %v831 = vsel %vm829, %v824, 0
        %v834 = vsel %vm829, %v828, 0
        %836 = vmatprep.subr.bf16.mxu0 0
        %837 = vmatpush1.bf16.xpose.msra.mxu0 %v834
        %838 = vmatprep.subr.bf16.mxu0 0
        %839 = vmatpush1.bf16.xpose.msra.mxu0 0
        %840 = vmatprep.subr.bf16.mxu0 0
        %841 = vmatpush1.bf16.xpose.msra.mxu0 0
        %842 = vmatprep.subr.bf16.mxu0 0
        %843 = vmatpush1.bf16.xpose.msra.mxu0 0
        %844 = vmatprep.subr.bf16.mxu0 0
        %845 = vmatpush1.bf16.xpose.msra.mxu0 0
        %846 = vmatprep.subr.bf16.mxu0 0
        %847 = vmatpush1.bf16.xpose.msra.mxu0 0
        %848 = vmatprep.subr.bf16.mxu0 0
        %849 = vmatpush1.bf16.xpose.msra.mxu0 0
        %850 = vmatprep.subr.bf16.mxu0 0
        %851 = vmatpush1.bf16.xpose.msra.mxu0 0
        %852 = vmatprep.subr.bf16.mxu0 0
        %853 = vmatpush1.bf16.xpose.msra.mxu0 0
        %854 = vmatprep.subr.bf16.mxu0 0
        %855 = vmatpush1.bf16.xpose.msra.mxu0 0
        %856 = vmatprep.subr.bf16.mxu0 0
        %857 = vmatpush1.bf16.xpose.msra.mxu0 0
        %858 = vmatprep.subr.bf16.mxu0 0
        %859 = vmatpush1.bf16.xpose.msra.mxu0 0
        %860 = vmatprep.subr.bf16.mxu0 0
        %861 = vmatpush1.bf16.xpose.msra.mxu0 0
        %862 = vmatprep.subr.bf16.mxu0 0
        %863 = vmatpush1.bf16.xpose.msra.mxu0 0
        %864 = vmatprep.subr.bf16.mxu0 0
        %865 = vmatpush1.bf16.xpose.msra.mxu0 0
        %866 = vmatprep.subr.bf16.mxu0 0
        %867 = vmatpush1.bf16.xpose.msra.mxu0 0
        %868 = vmatprep.mubr.bf16.mxu0 0
        %869 = vmatmul.mubr.bf16.gmra.mrb[0].mxu0 %v831
        %v870 = vpop.f32.mrb[0].mxu0
        %v871 = vadd.f32 0.0, %v870
        %v872 = vpop.f32.mrb[0].mxu0
        %v873 = vpop.f32.mrb[0].mxu0
        %v874 = vpop.f32.mrb[0].mxu0
        %875 = vdwg.mxu0
        %877 = vrot.lane.b32.xlu0 %v825, 96
        %v878 = vpop.permute.xlu0 %877
        %v880 = vsel %vm829, %v825, 0
        %v883 = vsel %vm829, %v878, 0
        %885 = vmatprep.subr.bf16.mxu0 0
        %886 = vmatpush1.bf16.xpose.msra.mxu0 %v883
        %887 = vmatprep.subr.bf16.mxu0 0
        %888 = vmatpush1.bf16.xpose.msra.mxu0 0
        %889 = vmatprep.subr.bf16.mxu0 0
        %890 = vmatpush1.bf16.xpose.msra.mxu0 0
        %891 = vmatprep.subr.bf16.mxu0 0
        %892 = vmatpush1.bf16.xpose.msra.mxu0 0
        %893 = vmatprep.subr.bf16.mxu0 0
        %894 = vmatpush1.bf16.xpose.msra.mxu0 0
        %895 = vmatprep.subr.bf16.mxu0 0
        %896 = vmatpush1.bf16.xpose.msra.mxu0 0
        %897 = vmatprep.subr.bf16.mxu0 0
        %898 = vmatpush1.bf16.xpose.msra.mxu0 0
        %899 = vmatprep.subr.bf16.mxu0 0
        %900 = vmatpush1.bf16.xpose.msra.mxu0 0
        %901 = vmatprep.subr.bf16.mxu0 0
        %902 = vmatpush1.bf16.xpose.msra.mxu0 0
        %903 = vmatprep.subr.bf16.mxu0 0
        %904 = vmatpush1.bf16.xpose.msra.mxu0 0
        %905 = vmatprep.subr.bf16.mxu0 0
        %906 = vmatpush1.bf16.xpose.msra.mxu0 0
        %907 = vmatprep.subr.bf16.mxu0 0
        %908 = vmatpush1.bf16.xpose.msra.mxu0 0
        %909 = vmatprep.subr.bf16.mxu0 0
        %910 = vmatpush1.bf16.xpose.msra.mxu0 0
        %911 = vmatprep.subr.bf16.mxu0 0
        %912 = vmatpush1.bf16.xpose.msra.mxu0 0
        %913 = vmatprep.subr.bf16.mxu0 0
        %914 = vmatpush1.bf16.xpose.msra.mxu0 0
        %915 = vmatprep.subr.bf16.mxu0 0
        %916 = vmatpush1.bf16.xpose.msra.mxu0 0
        %917 = vmatprep.mubr.bf16.mxu0 0
        %918 = vmatmul.mubr.bf16.gmra.mrb[0].mxu0 %v880
        %v919 = vpop.f32.mrb[0].mxu0
        %v920 = vadd.f32 0.0, %v919
        %v921 = vpop.f32.mrb[0].mxu0
        %v922 = vpop.f32.mrb[0].mxu0
        %v923 = vpop.f32.mrb[0].mxu0
        %924 = vdwg.mxu0
        %v925 = vsel %vm829, %v871, -inf
        %926 = vmax.xlane.f32.xlu0 %v925
        %v927 = vpop.xlane.xlu0 %926
        %v928 = vsel %vm829, %v920, -inf
        %929 = vmax.xlane.f32.xlu0 %v928
        %v930 = vpop.xlane.xlu0 %929
        %v931 = vsub.f32 %v871, %v927
        %v932 = vsub.f32 %v920, %v930
        %v933 = vmul.f32 %v931, 1.442695
        %v934 = vpow.pop %v933
        %v935 = vmul.f32 %v932, 1.442695
        %v936 = vpow.pop %v935
        %v937 = vsel %vm829, %v934, 0.0
        %938 = vadd.xlane.f32.xlu0 %v937
        %v939 = vpop.xlane.xlu0 %938
        %v940 = vsel %vm829, %v936, 0.0
        %941 = vadd.xlane.f32.xlu0 %v940
        %v942 = vpop.xlane.xlu0 %941
        %v943 = vrcp.pop %v939
        %v944 = vmul.f32 %v934, %v943
        %v945 = vrcp.pop %v942
        %v946 = vmul.f32 %v936, %v945
        %v947 = vpack.c.bf16 %v944, %v944
        %v948 = vpack.c.bf16 %v946, %v946
        %949 = vrot.lane.b32.xlu0 %v824, 64
        %v950 = vpop.permute.xlu0 %949
        %v952 = vsel %vm829, %v947, 0
        %vm954 = vcmask 1043456
        %v956 = vsel %vm954, %v950, 0
        %958 = vmatprep.subr.bf16.mxu0 0
        %959 = vmatpush1.bf16.msra.mxu0 %v956
        %960 = vmatprep.subr.bf16.mxu0 0
        %961 = vmatpush1.bf16.msra.mxu0 0
        %962 = vmatprep.subr.bf16.mxu0 0
        %963 = vmatpush1.bf16.msra.mxu0 0
        %964 = vmatprep.subr.bf16.mxu0 0
        %965 = vmatpush1.bf16.msra.mxu0 0
        %966 = vmatprep.subr.bf16.mxu0 0
        %967 = vmatpush1.bf16.msra.mxu0 0
        %968 = vmatprep.subr.bf16.mxu0 0
        %969 = vmatpush1.bf16.msra.mxu0 0
        %970 = vmatprep.subr.bf16.mxu0 0
        %971 = vmatpush1.bf16.msra.mxu0 0
        %972 = vmatprep.subr.bf16.mxu0 0
        %973 = vmatpush1.bf16.msra.mxu0 0
        %974 = vmatprep.subr.bf16.mxu0 0
        %975 = vmatpush1.bf16.msra.mxu0 0
        %976 = vmatprep.subr.bf16.mxu0 0
        %977 = vmatpush1.bf16.msra.mxu0 0
        %978 = vmatprep.subr.bf16.mxu0 0
        %979 = vmatpush1.bf16.msra.mxu0 0
        %980 = vmatprep.subr.bf16.mxu0 0
        %981 = vmatpush1.bf16.msra.mxu0 0
        %982 = vmatprep.subr.bf16.mxu0 0
        %983 = vmatpush1.bf16.msra.mxu0 0
        %984 = vmatprep.subr.bf16.mxu0 0
        %985 = vmatpush1.bf16.msra.mxu0 0
        %986 = vmatprep.subr.bf16.mxu0 0
        %987 = vmatpush1.bf16.msra.mxu0 0
        %988 = vmatprep.subr.bf16.mxu0 0
        %989 = vmatpush1.bf16.msra.mxu0 0
        %990 = vmatprep.mubr.bf16.mxu0 0
        %991 = vmatmul.mubr.bf16.gmra.mrb[0].mxu0 %v952
        %v992 = vpop.f32.mrb[0].mxu0
        %v993 = vadd.f32 0.0, %v992
        %v994 = vpop.f32.mrb[0].mxu0
        %v995 = vpop.f32.mrb[0].mxu0
        %v996 = vpop.f32.mrb[0].mxu0
        %997 = vdwg.mxu0
        %998 = vrot.lane.b32.xlu0 %v825, 64
        %v999 = vpop.permute.xlu0 %998
        %v1001 = vsel %vm829, %v948, 0
        %v1004 = vsel %vm954, %v999, 0
        %1006 = vmatprep.subr.bf16.mxu0 0
        %1007 = vmatpush1.bf16.msra.mxu0 %v1004
        %1008 = vmatprep.subr.bf16.mxu0 0
        %1009 = vmatpush1.bf16.msra.mxu0 0
        %1010 = vmatprep.subr.bf16.mxu0 0
        %1011 = vmatpush1.bf16.msra.mxu0 0
        %1012 = vmatprep.subr.bf16.mxu0 0
        %1013 = vmatpush1.bf16.msra.mxu0 0
        %1014 = vmatprep.subr.bf16.mxu0 0
        %1015 = vmatpush1.bf16.msra.mxu0 0
        %1016 = vmatprep.subr.bf16.mxu0 0
        %1017 = vmatpush1.bf16.msra.mxu0 0
        %1018 = vmatprep.subr.bf16.mxu0 0
        %1019 = vmatpush1.bf16.msra.mxu0 0
        %1020 = vmatprep.subr.bf16.mxu0 0
        %1021 = vmatpush1.bf16.msra.mxu0 0
        %1022 = vmatprep.subr.bf16.mxu0 0
        %1023 = vmatpush1.bf16.msra.mxu0 0
        %1024 = vmatprep.subr.bf16.mxu0 0
        %1025 = vmatpush1.bf16.msra.mxu0 0
        %1026 = vmatprep.subr.bf16.mxu0 0
        %1027 = vmatpush1.bf16.msra.mxu0 0
        %1028 = vmatprep.subr.bf16.mxu0 0
        %1029 = vmatpush1.bf16.msra.mxu0 0
        %1030 = vmatprep.subr.bf16.mxu0 0
        %1031 = vmatpush1.bf16.msra.mxu0 0
        %1032 = vmatprep.subr.bf16.mxu0 0
        %1033 = vmatpush1.bf16.msra.mxu0 0
        %1034 = vmatprep.subr.bf16.mxu0 0
        %1035 = vmatpush1.bf16.msra.mxu0 0
        %1036 = vmatprep.subr.bf16.mxu0 0
        %1037 = vmatpush1.bf16.msra.mxu0 0
        %1038 = vmatprep.mubr.bf16.mxu0 0
        %1039 = vmatmul.mubr.bf16.gmra.mrb[0].mxu0 %v1001
        %v1040 = vpop.f32.mrb[0].mxu0
        %v1041 = vadd.f32 0.0, %v1040
        %v1042 = vpop.f32.mrb[0].mxu0
        %v1043 = vpop.f32.mrb[0].mxu0
        %v1044 = vpop.f32.mrb[0].mxu0
        %1045 = vdwg.mxu0
        %1046 = vrot.lane.b32.xlu0 %v824, 120
        %v1047 = vpop.permute.xlu0 %1046
        %1048 = vrot.lane.b32.xlu0 %v824, 88
        %v1049 = vpop.permute.xlu0 %1048
        %v1051 = vsel %vm829, %v1047, 0
        %v1054 = vsel %vm829, %v1049, 0
        %1056 = vmatprep.subr.bf16.mxu0 0
        %1057 = vmatpush1.bf16.xpose.msra.mxu0 %v1054
        %1058 = vmatprep.subr.bf16.mxu0 0
        %1059 = vmatpush1.bf16.xpose.msra.mxu0 0
        %1060 = vmatprep.subr.bf16.mxu0 0
        %1061 = vmatpush1.bf16.xpose.msra.mxu0 0
        %1062 = vmatprep.subr.bf16.mxu0 0
        %1063 = vmatpush1.bf16.xpose.msra.mxu0 0
        %1064 = vmatprep.subr.bf16.mxu0 0
        %1065 = vmatpush1.bf16.xpose.msra.mxu0 0
        %1066 = vmatprep.subr.bf16.mxu0 0
        %1067 = vmatpush1.bf16.xpose.msra.mxu0 0
        %1068 = vmatprep.subr.bf16.mxu0 0
        %1069 = vmatpush1.bf16.xpose.msra.mxu0 0
        %1070 = vmatprep.subr.bf16.mxu0 0
        %1071 = vmatpush1.bf16.xpose.msra.mxu0 0
        %1072 = vmatprep.subr.bf16.mxu0 0
        %1073 = vmatpush1.bf16.xpose.msra.mxu0 0
        %1074 = vmatprep.subr.bf16.mxu0 0
        %1075 = vmatpush1.bf16.xpose.msra.mxu0 0
        %1076 = vmatprep.subr.bf16.mxu0 0
        %1077 = vmatpush1.bf16.xpose.msra.mxu0 0
        %1078 = vmatprep.subr.bf16.mxu0 0
        %1079 = vmatpush1.bf16.xpose.msra.mxu0 0
        %1080 = vmatprep.subr.bf16.mxu0 0
        %1081 = vmatpush1.bf16.xpose.msra.mxu0 0
        %1082 = vmatprep.subr.bf16.mxu0 0
        %1083 = vmatpush1.bf16.xpose.msra.mxu0 0
        %1084 = vmatprep.subr.bf16.mxu0 0
        %1085 = vmatpush1.bf16.xpose.msra.mxu0 0
        %1086 = vmatprep.subr.bf16.mxu0 0
        %1087 = vmatpush1.bf16.xpose.msra.mxu0 0
        %1088 = vmatprep.mubr.bf16.mxu0 0
        %1089 = vmatmul.mubr.bf16.gmra.mrb[0].mxu0 %v1051
        %v1090 = vpop.f32.mrb[0].mxu0
        %v1091 = vadd.f32 0.0, %v1090
        %v1092 = vpop.f32.mrb[0].mxu0
        %v1093 = vpop.f32.mrb[0].mxu0
        %v1094 = vpop.f32.mrb[0].mxu0
        %1095 = vdwg.mxu0
        %1096 = vrot.lane.b32.xlu0 %v825, 120
        %v1097 = vpop.permute.xlu0 %1096
        %1098 = vrot.lane.b32.xlu0 %v825, 88
        %v1099 = vpop.permute.xlu0 %1098
        %v1101 = vsel %vm829, %v1097, 0
        %v1104 = vsel %vm829, %v1099, 0
        %1106 = vmatprep.subr.bf16.mxu0 0
        %1107 = vmatpush1.bf16.xpose.msra.mxu0 %v1104
        %1108 = vmatprep.subr.bf16.mxu0 0
        %1109 = vmatpush1.bf16.xpose.msra.mxu0 0
        %1110 = vmatprep.subr.bf16.mxu0 0
        %1111 = vmatpush1.bf16.xpose.msra.mxu0 0
        %1112 = vmatprep.subr.bf16.mxu0 0
        %1113 = vmatpush1.bf16.xpose.msra.mxu0 0
        %1114 = vmatprep.subr.bf16.mxu0 0
        %1115 = vmatpush1.bf16.xpose.msra.mxu0 0
        %1116 = vmatprep.subr.bf16.mxu0 0
        %1117 = vmatpush1.bf16.xpose.msra.mxu0 0
        %1118 = vmatprep.subr.bf16.mxu0 0
        %1119 = vmatpush1.bf16.xpose.msra.mxu0 0
        %1120 = vmatprep.subr.bf16.mxu0 0
        %1121 = vmatpush1.bf16.xpose.msra.mxu0 0
        %1122 = vmatprep.subr.bf16.mxu0 0
        %1123 = vmatpush1.bf16.xpose.msra.mxu0 0
        %1124 = vmatprep.subr.bf16.mxu0 0
        %1125 = vmatpush1.bf16.xpose.msra.mxu0 0
        %1126 = vmatprep.subr.bf16.mxu0 0
        %1127 = vmatpush1.bf16.xpose.msra.mxu0 0
        %1128 = vmatprep.subr.bf16.mxu0 0
        %1129 = vmatpush1.bf16.xpose.msra.mxu0 0
        %1130 = vmatprep.subr.bf16.mxu0 0
        %1131 = vmatpush1.bf16.xpose.msra.mxu0 0
        %1132 = vmatprep.subr.bf16.mxu0 0
        %1133 = vmatpush1.bf16.xpose.msra.mxu0 0
        %1134 = vmatprep.subr.bf16.mxu0 0
        %1135 = vmatpush1.bf16.xpose.msra.mxu0 0
        %1136 = vmatprep.subr.bf16.mxu0 0
        %1137 = vmatpush1.bf16.xpose.msra.mxu0 0
        %1138 = vmatprep.mubr.bf16.mxu0 0
        %1139 = vmatmul.mubr.bf16.gmra.mrb[0].mxu0 %v1101
        %v1140 = vpop.f32.mrb[0].mxu0
        %v1141 = vadd.f32 0.0, %v1140
        %v1142 = vpop.f32.mrb[0].mxu0
        %v1143 = vpop.f32.mrb[0].mxu0
        %v1144 = vpop.f32.mrb[0].mxu0
        %1145 = vdwg.mxu0
        %v1146 = vsel %vm829, %v1091, -inf
        %1147 = vmax.xlane.f32.xlu0 %v1146
        %v1148 = vpop.xlane.xlu0 %1147
        %v1149 = vsel %vm829, %v1141, -inf
        %1150 = vmax.xlane.f32.xlu0 %v1149
        %v1151 = vpop.xlane.xlu0 %1150
        %v1152 = vsub.f32 %v1091, %v1148
        %v1153 = vsub.f32 %v1141, %v1151
        %v1154 = vmul.f32 %v1152, 1.442695
        %v1155 = vpow.pop %v1154
        %v1156 = vmul.f32 %v1153, 1.442695
        %v1157 = vpow.pop %v1156
        %v1158 = vsel %vm829, %v1155, 0.0
        %1159 = vadd.xlane.f32.xlu0 %v1158
        %v1160 = vpop.xlane.xlu0 %1159
        %v1161 = vsel %vm829, %v1157, 0.0
        %1162 = vadd.xlane.f32.xlu0 %v1161
        %v1163 = vpop.xlane.xlu0 %1162
        %v1164 = vrcp.pop %v1160
        %v1165 = vmul.f32 %v1155, %v1164
        %v1166 = vrcp.pop %v1163
        %v1167 = vmul.f32 %v1157, %v1166
        %v1168 = vpack.c.bf16 %v1165, %v1165
        %v1169 = vpack.c.bf16 %v1167, %v1167
        %1170 = vrot.lane.b32.xlu0 %v824, 56
        %v1171 = vpop.permute.xlu0 %1170
        %v1173 = vsel %vm829, %v1168, 0
        %v1176 = vsel %vm954, %v1171, 0
        %1178 = vmatprep.subr.bf16.mxu0 0
        %1179 = vmatpush1.bf16.msra.mxu0 %v1176
        %1180 = vmatprep.subr.bf16.mxu0 0
        %1181 = vmatpush1.bf16.msra.mxu0 0
        %1182 = vmatprep.subr.bf16.mxu0 0
        %1183 = vmatpush1.bf16.msra.mxu0 0
        %1184 = vmatprep.subr.bf16.mxu0 0
        %1185 = vmatpush1.bf16.msra.mxu0 0
        %1186 = vmatprep.subr.bf16.mxu0 0
        %1187 = vmatpush1.bf16.msra.mxu0 0
        %1188 = vmatprep.subr.bf16.mxu0 0
        %1189 = vmatpush1.bf16.msra.mxu0 0
        %1190 = vmatprep.subr.bf16.mxu0 0
        %1191 = vmatpush1.bf16.msra.mxu0 0
        %1192 = vmatprep.subr.bf16.mxu0 0
        %1193 = vmatpush1.bf16.msra.mxu0 0
        %1194 = vmatprep.subr.bf16.mxu0 0
        %1195 = vmatpush1.bf16.msra.mxu0 0
        %1196 = vmatprep.subr.bf16.mxu0 0
        %1197 = vmatpush1.bf16.msra.mxu0 0
        %1198 = vmatprep.subr.bf16.mxu0 0
        %1199 = vmatpush1.bf16.msra.mxu0 0
        %1200 = vmatprep.subr.bf16.mxu0 0
        %1201 = vmatpush1.bf16.msra.mxu0 0
        %1202 = vmatprep.subr.bf16.mxu0 0
        %1203 = vmatpush1.bf16.msra.mxu0 0
        %1204 = vmatprep.subr.bf16.mxu0 0
        %1205 = vmatpush1.bf16.msra.mxu0 0
        %1206 = vmatprep.subr.bf16.mxu0 0
        %1207 = vmatpush1.bf16.msra.mxu0 0
        %1208 = vmatprep.subr.bf16.mxu0 0
        %1209 = vmatpush1.bf16.msra.mxu0 0
        %1210 = vmatprep.mubr.bf16.mxu0 0
        %1211 = vmatmul.mubr.bf16.gmra.mrb[0].mxu0 %v1173
        %v1212 = vpop.f32.mrb[0].mxu0
        %v1213 = vadd.f32 0.0, %v1212
        %v1214 = vpop.f32.mrb[0].mxu0
        %v1215 = vpop.f32.mrb[0].mxu0
        %v1216 = vpop.f32.mrb[0].mxu0
        %1217 = vdwg.mxu0
        %1218 = vrot.lane.b32.xlu0 %v825, 56
        %v1219 = vpop.permute.xlu0 %1218
        %v1221 = vsel %vm829, %v1169, 0
        %v1224 = vsel %vm954, %v1219, 0
        %1226 = vmatprep.subr.bf16.mxu0 0
        %1227 = vmatpush1.bf16.msra.mxu0 %v1224
        %1228 = vmatprep.subr.bf16.mxu0 0
        %1229 = vmatpush1.bf16.msra.mxu0 0
        %1230 = vmatprep.subr.bf16.mxu0 0
        %1231 = vmatpush1.bf16.msra.mxu0 0
        %1232 = vmatprep.subr.bf16.mxu0 0
        %1233 = vmatpush1.bf16.msra.mxu0 0
        %1234 = vmatprep.subr.bf16.mxu0 0
        %1235 = vmatpush1.bf16.msra.mxu0 0
        %1236 = vmatprep.subr.bf16.mxu0 0
        %1237 = vmatpush1.bf16.msra.mxu0 0
        %1238 = vmatprep.subr.bf16.mxu0 0
        %1239 = vmatpush1.bf16.msra.mxu0 0
        %1240 = vmatprep.subr.bf16.mxu0 0
        %1241 = vmatpush1.bf16.msra.mxu0 0
        %1242 = vmatprep.subr.bf16.mxu0 0
        %1243 = vmatpush1.bf16.msra.mxu0 0
        %1244 = vmatprep.subr.bf16.mxu0 0
        %1245 = vmatpush1.bf16.msra.mxu0 0
        %1246 = vmatprep.subr.bf16.mxu0 0
        %1247 = vmatpush1.bf16.msra.mxu0 0
        %1248 = vmatprep.subr.bf16.mxu0 0
        %1249 = vmatpush1.bf16.msra.mxu0 0
        %1250 = vmatprep.subr.bf16.mxu0 0
        %1251 = vmatpush1.bf16.msra.mxu0 0
        %1252 = vmatprep.subr.bf16.mxu0 0
        %1253 = vmatpush1.bf16.msra.mxu0 0
        %1254 = vmatprep.subr.bf16.mxu0 0
        %1255 = vmatpush1.bf16.msra.mxu0 0
        %1256 = vmatprep.subr.bf16.mxu0 0
        %1257 = vmatpush1.bf16.msra.mxu0 0
        %1258 = vmatprep.mubr.bf16.mxu0 0
        %1259 = vmatmul.mubr.bf16.gmra.mrb[0].mxu0 %v1221
        %v1260 = vpop.f32.mrb[0].mxu0
        %v1261 = vadd.f32 0.0, %v1260
        %v1262 = vpop.f32.mrb[0].mxu0
        %v1263 = vpop.f32.mrb[0].mxu0
        %v1264 = vpop.f32.mrb[0].mxu0
        %1265 = vdwg.mxu0
        %1266 = vrot.lane.b32.xlu0 %v824, 112
        %v1267 = vpop.permute.xlu0 %1266
        %1268 = vrot.lane.b32.xlu0 %v824, 80
        %v1269 = vpop.permute.xlu0 %1268
        %v1271 = vsel %vm829, %v1267, 0
        %v1274 = vsel %vm829, %v1269, 0
        %1276 = vmatprep.subr.bf16.mxu0 0
        %1277 = vmatpush1.bf16.xpose.msra.mxu0 %v1274
        %1278 = vmatprep.subr.bf16.mxu0 0
        %1279 = vmatpush1.bf16.xpose.msra.mxu0 0
        %1280 = vmatprep.subr.bf16.mxu0 0
        %1281 = vmatpush1.bf16.xpose.msra.mxu0 0
        %1282 = vmatprep.subr.bf16.mxu0 0
        %1283 = vmatpush1.bf16.xpose.msra.mxu0 0
        %1284 = vmatprep.subr.bf16.mxu0 0
        %1285 = vmatpush1.bf16.xpose.msra.mxu0 0
        %1286 = vmatprep.subr.bf16.mxu0 0
        %1287 = vmatpush1.bf16.xpose.msra.mxu0 0
        %1288 = vmatprep.subr.bf16.mxu0 0
        %1289 = vmatpush1.bf16.xpose.msra.mxu0 0
        %1290 = vmatprep.subr.bf16.mxu0 0
        %1291 = vmatpush1.bf16.xpose.msra.mxu0 0
        %1292 = vmatprep.subr.bf16.mxu0 0
        %1293 = vmatpush1.bf16.xpose.msra.mxu0 0
        %1294 = vmatprep.subr.bf16.mxu0 0
        %1295 = vmatpush1.bf16.xpose.msra.mxu0 0
        %1296 = vmatprep.subr.bf16.mxu0 0
        %1297 = vmatpush1.bf16.xpose.msra.mxu0 0
        %1298 = vmatprep.subr.bf16.mxu0 0
        %1299 = vmatpush1.bf16.xpose.msra.mxu0 0
        %1300 = vmatprep.subr.bf16.mxu0 0
        %1301 = vmatpush1.bf16.xpose.msra.mxu0 0
        %1302 = vmatprep.subr.bf16.mxu0 0
        %1303 = vmatpush1.bf16.xpose.msra.mxu0 0
        %1304 = vmatprep.subr.bf16.mxu0 0
        %1305 = vmatpush1.bf16.xpose.msra.mxu0 0
        %1306 = vmatprep.subr.bf16.mxu0 0
        %1307 = vmatpush1.bf16.xpose.msra.mxu0 0
        %1308 = vmatprep.mubr.bf16.mxu0 0
        %1309 = vmatmul.mubr.bf16.gmra.mrb[0].mxu0 %v1271
        %v1310 = vpop.f32.mrb[0].mxu0
        %v1311 = vadd.f32 0.0, %v1310
        %v1312 = vpop.f32.mrb[0].mxu0
        %v1313 = vpop.f32.mrb[0].mxu0
        %v1314 = vpop.f32.mrb[0].mxu0
        %1315 = vdwg.mxu0
        %1316 = vrot.lane.b32.xlu0 %v825, 112
        %v1317 = vpop.permute.xlu0 %1316
        %1318 = vrot.lane.b32.xlu0 %v825, 80
        %v1319 = vpop.permute.xlu0 %1318
        %v1321 = vsel %vm829, %v1317, 0
        %v1324 = vsel %vm829, %v1319, 0
        %1326 = vmatprep.subr.bf16.mxu0 0
        %1327 = vmatpush1.bf16.xpose.msra.mxu0 %v1324
        %1328 = vmatprep.subr.bf16.mxu0 0
        %1329 = vmatpush1.bf16.xpose.msra.mxu0 0
        %1330 = vmatprep.subr.bf16.mxu0 0
        %1331 = vmatpush1.bf16.xpose.msra.mxu0 0
        %1332 = vmatprep.subr.bf16.mxu0 0
        %1333 = vmatpush1.bf16.xpose.msra.mxu0 0
        %1334 = vmatprep.subr.bf16.mxu0 0
        %1335 = vmatpush1.bf16.xpose.msra.mxu0 0
        %1336 = vmatprep.subr.bf16.mxu0 0
        %1337 = vmatpush1.bf16.xpose.msra.mxu0 0
        %1338 = vmatprep.subr.bf16.mxu0 0
        %1339 = vmatpush1.bf16.xpose.msra.mxu0 0
        %1340 = vmatprep.subr.bf16.mxu0 0
        %1341 = vmatpush1.bf16.xpose.msra.mxu0 0
        %1342 = vmatprep.subr.bf16.mxu0 0
        %1343 = vmatpush1.bf16.xpose.msra.mxu0 0
        %1344 = vmatprep.subr.bf16.mxu0 0
        %1345 = vmatpush1.bf16.xpose.msra.mxu0 0
        %1346 = vmatprep.subr.bf16.mxu0 0
        %1347 = vmatpush1.bf16.xpose.msra.mxu0 0
        %1348 = vmatprep.subr.bf16.mxu0 0
        %1349 = vmatpush1.bf16.xpose.msra.mxu0 0
        %1350 = vmatprep.subr.bf16.mxu0 0
        %1351 = vmatpush1.bf16.xpose.msra.mxu0 0
        %1352 = vmatprep.subr.bf16.mxu0 0
        %1353 = vmatpush1.bf16.xpose.msra.mxu0 0
        %1354 = vmatprep.subr.bf16.mxu0 0
        %1355 = vmatpush1.bf16.xpose.msra.mxu0 0
        %1356 = vmatprep.subr.bf16.mxu0 0
        %1357 = vmatpush1.bf16.xpose.msra.mxu0 0
        %1358 = vmatprep.mubr.bf16.mxu0 0
        %1359 = vmatmul.mubr.bf16.gmra.mrb[0].mxu0 %v1321
        %v1360 = vpop.f32.mrb[0].mxu0
        %v1361 = vadd.f32 0.0, %v1360
        %v1362 = vpop.f32.mrb[0].mxu0
        %v1363 = vpop.f32.mrb[0].mxu0
        %v1364 = vpop.f32.mrb[0].mxu0
        %1365 = vdwg.mxu0
        %v1366 = vsel %vm829, %v1311, -inf
        %1367 = vmax.xlane.f32.xlu0 %v1366
        %v1368 = vpop.xlane.xlu0 %1367
        %v1369 = vsel %vm829, %v1361, -inf
        %1370 = vmax.xlane.f32.xlu0 %v1369
        %v1371 = vpop.xlane.xlu0 %1370
        %v1372 = vsub.f32 %v1311, %v1368
        %v1373 = vsub.f32 %v1361, %v1371
        %v1374 = vmul.f32 %v1372, 1.442695
        %v1375 = vpow.pop %v1374
        %v1376 = vmul.f32 %v1373, 1.442695
        %v1377 = vpow.pop %v1376
        %v1378 = vsel %vm829, %v1375, 0.0
        %1379 = vadd.xlane.f32.xlu0 %v1378
        %v1380 = vpop.xlane.xlu0 %1379
        %v1381 = vsel %vm829, %v1377, 0.0
        %1382 = vadd.xlane.f32.xlu0 %v1381
        %v1383 = vpop.xlane.xlu0 %1382
        %v1384 = vrcp.pop %v1380
        %v1385 = vmul.f32 %v1375, %v1384
        %v1386 = vrcp.pop %v1383
        %v1387 = vmul.f32 %v1377, %v1386
        %v1388 = vpack.c.bf16 %v1385, %v1385
        %v1389 = vpack.c.bf16 %v1387, %v1387
        %1390 = vrot.lane.b32.xlu0 %v824, 48
        %v1391 = vpop.permute.xlu0 %1390
        %v1393 = vsel %vm829, %v1388, 0
        %v1396 = vsel %vm954, %v1391, 0
        %1398 = vmatprep.subr.bf16.mxu0 0
        %1399 = vmatpush1.bf16.msra.mxu0 %v1396
        %1400 = vmatprep.subr.bf16.mxu0 0
        %1401 = vmatpush1.bf16.msra.mxu0 0
        %1402 = vmatprep.subr.bf16.mxu0 0
        %1403 = vmatpush1.bf16.msra.mxu0 0
        %1404 = vmatprep.subr.bf16.mxu0 0
        %1405 = vmatpush1.bf16.msra.mxu0 0
        %1406 = vmatprep.subr.bf16.mxu0 0
        %1407 = vmatpush1.bf16.msra.mxu0 0
        %1408 = vmatprep.subr.bf16.mxu0 0
        %1409 = vmatpush1.bf16.msra.mxu0 0
        %1410 = vmatprep.subr.bf16.mxu0 0
        %1411 = vmatpush1.bf16.msra.mxu0 0
        %1412 = vmatprep.subr.bf16.mxu0 0
        %1413 = vmatpush1.bf16.msra.mxu0 0
        %1414 = vmatprep.subr.bf16.mxu0 0
        %1415 = vmatpush1.bf16.msra.mxu0 0
        %1416 = vmatprep.subr.bf16.mxu0 0
        %1417 = vmatpush1.bf16.msra.mxu0 0
        %1418 = vmatprep.subr.bf16.mxu0 0
        %1419 = vmatpush1.bf16.msra.mxu0 0
        %1420 = vmatprep.subr.bf16.mxu0 0
        %1421 = vmatpush1.bf16.msra.mxu0 0
        %1422 = vmatprep.subr.bf16.mxu0 0
        %1423 = vmatpush1.bf16.msra.mxu0 0
        %1424 = vmatprep.subr.bf16.mxu0 0
        %1425 = vmatpush1.bf16.msra.mxu0 0
        %1426 = vmatprep.subr.bf16.mxu0 0
        %1427 = vmatpush1.bf16.msra.mxu0 0
        %1428 = vmatprep.subr.bf16.mxu0 0
        %1429 = vmatpush1.bf16.msra.mxu0 0
        %1430 = vmatprep.mubr.bf16.mxu0 0
        %1431 = vmatmul.mubr.bf16.gmra.mrb[0].mxu0 %v1393
        %v1432 = vpop.f32.mrb[0].mxu0
        %v1433 = vadd.f32 0.0, %v1432
        %v1434 = vpop.f32.mrb[0].mxu0
        %v1435 = vpop.f32.mrb[0].mxu0
        %v1436 = vpop.f32.mrb[0].mxu0
        %1437 = vdwg.mxu0
        %1438 = vrot.lane.b32.xlu0 %v825, 48
        %v1439 = vpop.permute.xlu0 %1438
        %v1441 = vsel %vm829, %v1389, 0
        %v1444 = vsel %vm954, %v1439, 0
        %1446 = vmatprep.subr.bf16.mxu0 0
        %1447 = vmatpush1.bf16.msra.mxu0 %v1444
        %1448 = vmatprep.subr.bf16.mxu0 0
        %1449 = vmatpush1.bf16.msra.mxu0 0
        %1450 = vmatprep.subr.bf16.mxu0 0
        %1451 = vmatpush1.bf16.msra.mxu0 0
        %1452 = vmatprep.subr.bf16.mxu0 0
        %1453 = vmatpush1.bf16.msra.mxu0 0
        %1454 = vmatprep.subr.bf16.mxu0 0
        %1455 = vmatpush1.bf16.msra.mxu0 0
        %1456 = vmatprep.subr.bf16.mxu0 0
        %1457 = vmatpush1.bf16.msra.mxu0 0
        %1458 = vmatprep.subr.bf16.mxu0 0
        %1459 = vmatpush1.bf16.msra.mxu0 0
        %1460 = vmatprep.subr.bf16.mxu0 0
        %1461 = vmatpush1.bf16.msra.mxu0 0
        %1462 = vmatprep.subr.bf16.mxu0 0
        %1463 = vmatpush1.bf16.msra.mxu0 0
        %1464 = vmatprep.subr.bf16.mxu0 0
        %1465 = vmatpush1.bf16.msra.mxu0 0
        %1466 = vmatprep.subr.bf16.mxu0 0
        %1467 = vmatpush1.bf16.msra.mxu0 0
        %1468 = vmatprep.subr.bf16.mxu0 0
        %1469 = vmatpush1.bf16.msra.mxu0 0
        %1470 = vmatprep.subr.bf16.mxu0 0
        %1471 = vmatpush1.bf16.msra.mxu0 0
        %1472 = vmatprep.subr.bf16.mxu0 0
        %1473 = vmatpush1.bf16.msra.mxu0 0
        %1474 = vmatprep.subr.bf16.mxu0 0
        %1475 = vmatpush1.bf16.msra.mxu0 0
        %1476 = vmatprep.subr.bf16.mxu0 0
        %1477 = vmatpush1.bf16.msra.mxu0 0
        %1478 = vmatprep.mubr.bf16.mxu0 0
        %1479 = vmatmul.mubr.bf16.gmra.mrb[0].mxu0 %v1441
        %v1480 = vpop.f32.mrb[0].mxu0
        %v1481 = vadd.f32 0.0, %v1480
        %v1482 = vpop.f32.mrb[0].mxu0
        %v1483 = vpop.f32.mrb[0].mxu0
        %v1484 = vpop.f32.mrb[0].mxu0
        %1485 = vdwg.mxu0
        %1486 = vrot.lane.b32.xlu0 %v824, 104
        %v1487 = vpop.permute.xlu0 %1486
        %1488 = vrot.lane.b32.xlu0 %v824, 72
        %v1489 = vpop.permute.xlu0 %1488
        %v1491 = vsel %vm829, %v1487, 0
        %v1494 = vsel %vm829, %v1489, 0
        %1496 = vmatprep.subr.bf16.mxu0 0
        %1497 = vmatpush1.bf16.xpose.msra.mxu0 %v1494
        %1498 = vmatprep.subr.bf16.mxu0 0
        %1499 = vmatpush1.bf16.xpose.msra.mxu0 0
        %1500 = vmatprep.subr.bf16.mxu0 0
        %1501 = vmatpush1.bf16.xpose.msra.mxu0 0
        %1502 = vmatprep.subr.bf16.mxu0 0
        %1503 = vmatpush1.bf16.xpose.msra.mxu0 0
        %1504 = vmatprep.subr.bf16.mxu0 0
        %1505 = vmatpush1.bf16.xpose.msra.mxu0 0
        %1506 = vmatprep.subr.bf16.mxu0 0
        %1507 = vmatpush1.bf16.xpose.msra.mxu0 0
        %1508 = vmatprep.subr.bf16.mxu0 0
        %1509 = vmatpush1.bf16.xpose.msra.mxu0 0
        %1510 = vmatprep.subr.bf16.mxu0 0
        %1511 = vmatpush1.bf16.xpose.msra.mxu0 0
        %1512 = vmatprep.subr.bf16.mxu0 0
        %1513 = vmatpush1.bf16.xpose.msra.mxu0 0
        %1514 = vmatprep.subr.bf16.mxu0 0
        %1515 = vmatpush1.bf16.xpose.msra.mxu0 0
        %1516 = vmatprep.subr.bf16.mxu0 0
        %1517 = vmatpush1.bf16.xpose.msra.mxu0 0
        %1518 = vmatprep.subr.bf16.mxu0 0
        %1519 = vmatpush1.bf16.xpose.msra.mxu0 0
        %1520 = vmatprep.subr.bf16.mxu0 0
        %1521 = vmatpush1.bf16.xpose.msra.mxu0 0
        %1522 = vmatprep.subr.bf16.mxu0 0
        %1523 = vmatpush1.bf16.xpose.msra.mxu0 0
        %1524 = vmatprep.subr.bf16.mxu0 0
        %1525 = vmatpush1.bf16.xpose.msra.mxu0 0
        %1526 = vmatprep.subr.bf16.mxu0 0
        %1527 = vmatpush1.bf16.xpose.msra.mxu0 0
        %1528 = vmatprep.mubr.bf16.mxu0 0
        %1529 = vmatmul.mubr.bf16.gmra.mrb[0].mxu0 %v1491
        %v1530 = vpop.f32.mrb[0].mxu0
        %v1531 = vadd.f32 0.0, %v1530
        %v1532 = vpop.f32.mrb[0].mxu0
        %v1533 = vpop.f32.mrb[0].mxu0
        %v1534 = vpop.f32.mrb[0].mxu0
        %1535 = vdwg.mxu0
        %1536 = vrot.lane.b32.xlu0 %v825, 104
        %v1537 = vpop.permute.xlu0 %1536
        %1538 = vrot.lane.b32.xlu0 %v825, 72
        %v1539 = vpop.permute.xlu0 %1538
        %v1541 = vsel %vm829, %v1537, 0
        %v1544 = vsel %vm829, %v1539, 0
        %1546 = vmatprep.subr.bf16.mxu0 0
        %1547 = vmatpush1.bf16.xpose.msra.mxu0 %v1544
        %1548 = vmatprep.subr.bf16.mxu0 0
        %1549 = vmatpush1.bf16.xpose.msra.mxu0 0
        %1550 = vmatprep.subr.bf16.mxu0 0
        %1551 = vmatpush1.bf16.xpose.msra.mxu0 0
        %1552 = vmatprep.subr.bf16.mxu0 0
        %1553 = vmatpush1.bf16.xpose.msra.mxu0 0
        %1554 = vmatprep.subr.bf16.mxu0 0
        %1555 = vmatpush1.bf16.xpose.msra.mxu0 0
        %1556 = vmatprep.subr.bf16.mxu0 0
        %1557 = vmatpush1.bf16.xpose.msra.mxu0 0
        %1558 = vmatprep.subr.bf16.mxu0 0
        %1559 = vmatpush1.bf16.xpose.msra.mxu0 0
        %1560 = vmatprep.subr.bf16.mxu0 0
        %1561 = vmatpush1.bf16.xpose.msra.mxu0 0
        %1562 = vmatprep.subr.bf16.mxu0 0
        %1563 = vmatpush1.bf16.xpose.msra.mxu0 0
        %1564 = vmatprep.subr.bf16.mxu0 0
        %1565 = vmatpush1.bf16.xpose.msra.mxu0 0
        %1566 = vmatprep.subr.bf16.mxu0 0
        %1567 = vmatpush1.bf16.xpose.msra.mxu0 0
        %1568 = vmatprep.subr.bf16.mxu0 0
        %1569 = vmatpush1.bf16.xpose.msra.mxu0 0
        %1570 = vmatprep.subr.bf16.mxu0 0
        %1571 = vmatpush1.bf16.xpose.msra.mxu0 0
        %1572 = vmatprep.subr.bf16.mxu0 0
        %1573 = vmatpush1.bf16.xpose.msra.mxu0 0
        %1574 = vmatprep.subr.bf16.mxu0 0
        %1575 = vmatpush1.bf16.xpose.msra.mxu0 0
        %1576 = vmatprep.subr.bf16.mxu0 0
        %1577 = vmatpush1.bf16.xpose.msra.mxu0 0
        %1578 = vmatprep.mubr.bf16.mxu0 0
        %1579 = vmatmul.mubr.bf16.gmra.mrb[0].mxu0 %v1541
        %v1580 = vpop.f32.mrb[0].mxu0
        %v1581 = vadd.f32 0.0, %v1580
        %v1582 = vpop.f32.mrb[0].mxu0
        %v1583 = vpop.f32.mrb[0].mxu0
        %v1584 = vpop.f32.mrb[0].mxu0
        %1585 = vdwg.mxu0
        %v1586 = vsel %vm829, %v1531, -inf
        %1587 = vmax.xlane.f32.xlu0 %v1586
        %v1588 = vpop.xlane.xlu0 %1587
        %v1589 = vsel %vm829, %v1581, -inf
        %1590 = vmax.xlane.f32.xlu0 %v1589
        %v1591 = vpop.xlane.xlu0 %1590
        %v1592 = vsub.f32 %v1531, %v1588
        %v1593 = vsub.f32 %v1581, %v1591
        %v1594 = vmul.f32 %v1592, 1.442695
        %v1595 = vpow.pop %v1594
        %v1596 = vmul.f32 %v1593, 1.442695
        %v1597 = vpow.pop %v1596
        %v1598 = vsel %vm829, %v1595, 0.0
        %1599 = vadd.xlane.f32.xlu0 %v1598
        %v1600 = vpop.xlane.xlu0 %1599
        %v1601 = vsel %vm829, %v1597, 0.0
        %1602 = vadd.xlane.f32.xlu0 %v1601
        %v1603 = vpop.xlane.xlu0 %1602
        %v1604 = vrcp.pop %v1600
        %v1605 = vmul.f32 %v1595, %v1604
        %v1606 = vrcp.pop %v1603
        %v1607 = vmul.f32 %v1597, %v1606
        %v1608 = vpack.c.bf16 %v1605, %v1605
        %v1609 = vpack.c.bf16 %v1607, %v1607
        %1610 = vrot.lane.b32.xlu0 %v824, 40
        %v1611 = vpop.permute.xlu0 %1610
        %v1613 = vsel %vm829, %v1608, 0
        %v1616 = vsel %vm954, %v1611, 0
        %1618 = vmatprep.subr.bf16.mxu0 0
        %1619 = vmatpush1.bf16.msra.mxu0 %v1616
        %1620 = vmatprep.subr.bf16.mxu0 0
        %1621 = vmatpush1.bf16.msra.mxu0 0
        %1622 = vmatprep.subr.bf16.mxu0 0
        %1623 = vmatpush1.bf16.msra.mxu0 0
        %1624 = vmatprep.subr.bf16.mxu0 0
        %1625 = vmatpush1.bf16.msra.mxu0 0
        %1626 = vmatprep.subr.bf16.mxu0 0
        %1627 = vmatpush1.bf16.msra.mxu0 0
        %1628 = vmatprep.subr.bf16.mxu0 0
        %1629 = vmatpush1.bf16.msra.mxu0 0
        %1630 = vmatprep.subr.bf16.mxu0 0
        %1631 = vmatpush1.bf16.msra.mxu0 0
        %1632 = vmatprep.subr.bf16.mxu0 0
        %1633 = vmatpush1.bf16.msra.mxu0 0
        %1634 = vmatprep.subr.bf16.mxu0 0
        %1635 = vmatpush1.bf16.msra.mxu0 0
        %1636 = vmatprep.subr.bf16.mxu0 0
        %1637 = vmatpush1.bf16.msra.mxu0 0
        %1638 = vmatprep.subr.bf16.mxu0 0
        %1639 = vmatpush1.bf16.msra.mxu0 0
        %1640 = vmatprep.subr.bf16.mxu0 0
        %1641 = vmatpush1.bf16.msra.mxu0 0
        %1642 = vmatprep.subr.bf16.mxu0 0
        %1643 = vmatpush1.bf16.msra.mxu0 0
        %1644 = vmatprep.subr.bf16.mxu0 0
        %1645 = vmatpush1.bf16.msra.mxu0 0
        %1646 = vmatprep.subr.bf16.mxu0 0
        %1647 = vmatpush1.bf16.msra.mxu0 0
        %1648 = vmatprep.subr.bf16.mxu0 0
        %1649 = vmatpush1.bf16.msra.mxu0 0
        %1650 = vmatprep.mubr.bf16.mxu0 0
        %1651 = vmatmul.mubr.bf16.gmra.mrb[0].mxu0 %v1613
        %v1652 = vpop.f32.mrb[0].mxu0
        %v1653 = vadd.f32 0.0, %v1652
        %v1654 = vpop.f32.mrb[0].mxu0
        %v1655 = vpop.f32.mrb[0].mxu0
        %v1656 = vpop.f32.mrb[0].mxu0
        %1657 = vdwg.mxu0
        %1658 = vrot.lane.b32.xlu0 %v825, 40
        %v1659 = vpop.permute.xlu0 %1658
        %v1661 = vsel %vm829, %v1609, 0
        %v1664 = vsel %vm954, %v1659, 0
        %1666 = vmatprep.subr.bf16.mxu0 0
        %1667 = vmatpush1.bf16.msra.mxu0 %v1664
        %1668 = vmatprep.subr.bf16.mxu0 0
        %1669 = vmatpush1.bf16.msra.mxu0 0
        %1670 = vmatprep.subr.bf16.mxu0 0
        %1671 = vmatpush1.bf16.msra.mxu0 0
        %1672 = vmatprep.subr.bf16.mxu0 0
        %1673 = vmatpush1.bf16.msra.mxu0 0
        %1674 = vmatprep.subr.bf16.mxu0 0
        %1675 = vmatpush1.bf16.msra.mxu0 0
        %1676 = vmatprep.subr.bf16.mxu0 0
        %1677 = vmatpush1.bf16.msra.mxu0 0
        %1678 = vmatprep.subr.bf16.mxu0 0
        %1679 = vmatpush1.bf16.msra.mxu0 0
        %1680 = vmatprep.subr.bf16.mxu0 0
        %1681 = vmatpush1.bf16.msra.mxu0 0
        %1682 = vmatprep.subr.bf16.mxu0 0
        %1683 = vmatpush1.bf16.msra.mxu0 0
        %1684 = vmatprep.subr.bf16.mxu0 0
        %1685 = vmatpush1.bf16.msra.mxu0 0
        %1686 = vmatprep.subr.bf16.mxu0 0
        %1687 = vmatpush1.bf16.msra.mxu0 0
        %1688 = vmatprep.subr.bf16.mxu0 0
        %1689 = vmatpush1.bf16.msra.mxu0 0
        %1690 = vmatprep.subr.bf16.mxu0 0
        %1691 = vmatpush1.bf16.msra.mxu0 0
        %1692 = vmatprep.subr.bf16.mxu0 0
        %1693 = vmatpush1.bf16.msra.mxu0 0
        %1694 = vmatprep.subr.bf16.mxu0 0
        %1695 = vmatpush1.bf16.msra.mxu0 0
        %1696 = vmatprep.subr.bf16.mxu0 0
        %1697 = vmatpush1.bf16.msra.mxu0 0
        %1698 = vmatprep.mubr.bf16.mxu0 0
        %1699 = vmatmul.mubr.bf16.gmra.mrb[0].mxu0 %v1661
        %v1700 = vpop.f32.mrb[0].mxu0
        %v1701 = vadd.f32 0.0, %v1700
        %v1702 = vpop.f32.mrb[0].mxu0
        %v1703 = vpop.f32.mrb[0].mxu0
        %v1704 = vpop.f32.mrb[0].mxu0
        %1705 = vdwg.mxu0
        %1708 = vrot.lane.b32.xlu0 %v1213, 8
        %v1709 = vpop.permute.xlu0 %1708
        %1710 = vrot.lane.b32.xlu0 %v1261, 8
        %v1711 = vpop.permute.xlu0 %1710
        %1716 = vrot.lane.b32.xlu0 %v1433, 16
        %v1717 = vpop.permute.xlu0 %1716
        %1718 = vrot.lane.b32.xlu0 %v1481, 16
        %v1719 = vpop.permute.xlu0 %1718
        %1724 = vrot.lane.b32.xlu0 %v1653, 24
        %v1725 = vpop.permute.xlu0 %1724
        %1726 = vrot.lane.b32.xlu0 %v1701, 24
        %v1727 = vpop.permute.xlu0 %1726
        %v1730 = vsel %vm829, %v993, %v1709
        %v1731 = vsel %vm829, %v1041, %v1711
        %vm1732 = vcmask 130048
        %v1733 = vsel %vm1732, %v1730, %v1717
        %v1734 = vsel %vm1732, %v1731, %v1719
        %vm1735 = vcmask 195584
        %v1736 = vsel %vm1735, %v1733, %v1725
        %v1737 = vsel %vm1735, %v1734, %v1727
        %v1738 = vpack.c.bf16 %v1737, %v1736
        %v1739 = vld [vmem:[%s680] sm:$0xf]
        %v1740 = vld [vmem:[%s680 + $0x4] sm:$0xf]
        %v1741 = vld [vmem:[%s680 + $0x8] sm:$0xf]
        %v1742 = vld [vmem:[%s680 + $0xc] sm:$0xf]
        %v1743 = vld [vmem:[%s683] sm:$0x1]
        %v1745 = vlaneseq
        %v1746 = vshrl.u32 %v1745, 7
        %v1747 = vsub.s32 0, %v1746
        %v1748 = vrot.slane %v1743, %v1747
        %v1754 = vunpack.c.l.b16 %v1739
        %v1755 = vunpack.c.l.b16 %v1740
        %v1756 = vunpack.c.l.b16 %v1741
        %v1757 = vunpack.c.l.b16 %v1742
        %v1758 = vpack.c.b16 %v1755, %v1754
        %v1759 = vpack.c.b16 %v1757, %v1756
        %v1763 = vsel %vm712, %v1738, 0
        %1765 = vmatprep.subr.bf16.mxu0 0
        %1766 = vmatpush1.bf16.msra.mxu0 %v1758
        %1767 = vmatprep.subr.bf16.mxu0 0
        %1768 = vmatpush1.bf16.msra.mxu0 %v1759
        %1769 = vmatprep.subr.bf16.mxu0 0
        %1770 = vmatpush1.bf16.msra.mxu0 0
        %1771 = vmatprep.subr.bf16.mxu0 0
        %1772 = vmatpush1.bf16.msra.mxu0 0
        %1773 = vmatprep.subr.bf16.mxu0 0
        %1774 = vmatpush1.bf16.msra.mxu0 0
        %1775 = vmatprep.subr.bf16.mxu0 0
        %1776 = vmatpush1.bf16.msra.mxu0 0
        %1777 = vmatprep.subr.bf16.mxu0 0
        %1778 = vmatpush1.bf16.msra.mxu0 0
        %1779 = vmatprep.subr.bf16.mxu0 0
        %1780 = vmatpush1.bf16.msra.mxu0 0
        %1781 = vmatprep.subr.bf16.mxu0 0
        %1782 = vmatpush1.bf16.msra.mxu0 0
        %1783 = vmatprep.subr.bf16.mxu0 0
        %1784 = vmatpush1.bf16.msra.mxu0 0
        %1785 = vmatprep.subr.bf16.mxu0 0
        %1786 = vmatpush1.bf16.msra.mxu0 0
        %1787 = vmatprep.subr.bf16.mxu0 0
        %1788 = vmatpush1.bf16.msra.mxu0 0
        %1789 = vmatprep.subr.bf16.mxu0 0
        %1790 = vmatpush1.bf16.msra.mxu0 0
        %1791 = vmatprep.subr.bf16.mxu0 0
        %1792 = vmatpush1.bf16.msra.mxu0 0
        %1793 = vmatprep.subr.bf16.mxu0 0
        %1794 = vmatpush1.bf16.msra.mxu0 0
        %1795 = vmatprep.subr.bf16.mxu0 0
        %1796 = vmatpush1.bf16.msra.mxu0 0
        %1797 = vmatprep.mubr.bf16.mxu0 0
        %1798 = vmatmul.mubr.bf16.gmra.mrb[0].mxu0 %v1763
        %v1799 = vpop.f32.mrb[0].mxu0
        %v1800 = vadd.f32 %v1748, %v1799
        %v1801 = vpop.f32.mrb[0].mxu0
        %v1802 = vpop.f32.mrb[0].mxu0
        %v1803 = vadd.f32 %v1748, %v1802
        %v1804 = vpop.f32.mrb[0].mxu0
        %1805 = vdwg.mxu0
        %v1806 = vadd.f32 %v708, %v1800
        %v1807 = vadd.f32 %v709, %v1803
        %v1808 = vld [vmem:[%s565] sm:$0x1]
        %v1809 = vld [vmem:[%s573] sm:$0x1]
        %v1810 = vsel %vm712, %v1806, 0.0
        %1811 = vadd.xlane.f32.xlu0 %v1810
        %v1812 = vpop.xlane.xlu0 %1811
        %v1813 = vsel %vm712, %v1807, 0.0
        %1814 = vadd.xlane.f32.xlu0 %v1813
        %v1815 = vpop.xlane.xlu0 %1814
        %v1816 = vmul.f32 %v1812, %v719
        %v1817 = vmul.f32 %v1815, %v719
        %v1818 = vsub.f32 %v1806, %v1816
        %v1819 = vsub.f32 %v1807, %v1817
        %v1820 = vmul.f32 %v1818, %v1818
        %v1821 = vmul.f32 %v1819, %v1819
        %v1822 = vsel %vm712, %v1820, 0.0
        %1823 = vadd.xlane.f32.xlu0 %v1822
        %v1824 = vpop.xlane.xlu0 %1823
        %v1825 = vsel %vm712, %v1821, 0.0
        %1826 = vadd.xlane.f32.xlu0 %v1825
        %v1827 = vpop.xlane.xlu0 %1826
        %v1828 = vmul.f32 %v1824, %v719
        %v1829 = vmul.f32 %v1827, %v719
        %v1830 = vadd.f32 %v1828, 1e-05
        %v1831 = vadd.f32 %v1829, 1e-05
        %v1832 = vrsqrt.pop %v1830
        %v1833 = vrsqrt.pop %v1831
        %v1834 = vmul.f32 %v1818, %v1832
        %v1835 = vmul.f32 %v1819, %v1833
        %v1837 = vlaneseq
        %v1838 = vshrl.u32 %v1837, 7
        %v1839 = vsub.s32 0, %v1838
        %v1840 = vrot.slane %v1808, %v1839
        %v1842 = vmul.f32 %v1834, %v1840
        %v1843 = vmul.f32 %v1835, %v1840
        %v1845 = vlaneseq
        %v1846 = vshrl.u32 %v1845, 7
        %v1847 = vsub.s32 0, %v1846
        %v1848 = vrot.slane %v1809, %v1847
        %v1850 = vadd.f32 %v1842, %v1848
        %v1851 = vadd.f32 %v1843, %v1848
        %v1852 = vpack.c.bf16 %v1851, %v1850
        %v1853 = vld [vmem:[%s688] sm:$0xf]
        %v1854 = vld [vmem:[%s688 + $0x4] sm:$0xf]
        %v1855 = vld [vmem:[%s688 + $0x8] sm:$0xf]
        %v1856 = vld [vmem:[%s688 + $0xc] sm:$0xf]
        %v1857 = vld [vmem:[%s581] sm:$0x1]
        %v1859 = vlaneseq
        %v1860 = vshrl.u32 %v1859, 7
        %v1861 = vsub.s32 0, %v1860
        %v1862 = vrot.slane %v1857, %v1861
        %v1868 = vunpack.c.l.b16 %v1853
        %v1869 = vunpack.c.l.b16 %v1854
        %v1870 = vunpack.c.l.b16 %v1855
        %v1871 = vunpack.c.l.b16 %v1856
        %v1872 = vpack.c.b16 %v1869, %v1868
        %v1873 = vpack.c.b16 %v1871, %v1870
        %v1877 = vsel %vm712, %v1852, 0
        %1879 = vmatprep.subr.bf16.mxu0 0
        %1880 = vmatpush1.bf16.msra.mxu0 %v1872
        %1881 = vmatprep.subr.bf16.mxu0 0
        %1882 = vmatpush1.bf16.msra.mxu0 %v1873
        %1883 = vmatprep.subr.bf16.mxu0 0
        %1884 = vmatpush1.bf16.msra.mxu0 0
        %1885 = vmatprep.subr.bf16.mxu0 0
        %1886 = vmatpush1.bf16.msra.mxu0 0
        %1887 = vmatprep.subr.bf16.mxu0 0
        %1888 = vmatpush1.bf16.msra.mxu0 0
        %1889 = vmatprep.subr.bf16.mxu0 0
        %1890 = vmatpush1.bf16.msra.mxu0 0
        %1891 = vmatprep.subr.bf16.mxu0 0
        %1892 = vmatpush1.bf16.msra.mxu0 0
        %1893 = vmatprep.subr.bf16.mxu0 0
        %1894 = vmatpush1.bf16.msra.mxu0 0
        %1895 = vmatprep.subr.bf16.mxu0 0
        %1896 = vmatpush1.bf16.msra.mxu0 0
        %1897 = vmatprep.subr.bf16.mxu0 0
        %1898 = vmatpush1.bf16.msra.mxu0 0
        %1899 = vmatprep.subr.bf16.mxu0 0
        %1900 = vmatpush1.bf16.msra.mxu0 0
        %1901 = vmatprep.subr.bf16.mxu0 0
        %1902 = vmatpush1.bf16.msra.mxu0 0
        %1903 = vmatprep.subr.bf16.mxu0 0
        %1904 = vmatpush1.bf16.msra.mxu0 0
        %1905 = vmatprep.subr.bf16.mxu0 0
        %1906 = vmatpush1.bf16.msra.mxu0 0
        %1907 = vmatprep.subr.bf16.mxu0 0
        %1908 = vmatpush1.bf16.msra.mxu0 0
        %1909 = vmatprep.subr.bf16.mxu0 0
        %1910 = vmatpush1.bf16.msra.mxu0 0
        %1911 = vmatprep.mubr.bf16.mxu0 0
        %1912 = vmatmul.mubr.bf16.gmra.mrb[0].mxu0 %v1877
        %v1913 = vpop.f32.mrb[0].mxu0
        %v1914 = vadd.f32 %v1862, %v1913
        %v1915 = vpop.f32.mrb[0].mxu0
        %v1916 = vpop.f32.mrb[0].mxu0
        %v1917 = vadd.f32 %v1862, %v1916
        %v1918 = vpop.f32.mrb[0].mxu0
        %1919 = vdwg.mxu0
        %v1920 = vmax.f32 %v1914, 0.0
        %v1921 = vmax.f32 %v1917, 0.0
        %v1922 = vpack.c.bf16 %v1921, %v1920
        %v1923 = vld [vmem:[%s693] sm:$0xf]
        %v1924 = vld [vmem:[%s693 + $0x4] sm:$0xf]
        %v1925 = vld [vmem:[%s693 + $0x8] sm:$0xf]
        %v1926 = vld [vmem:[%s693 + $0xc] sm:$0xf]
        %v1927 = vld [vmem:[%s693 + $0x10] sm:$0xf]
        %v1928 = vld [vmem:[%s693 + $0x14] sm:$0xf]
        %v1929 = vld [vmem:[%s693 + $0x18] sm:$0xf]
        %v1930 = vld [vmem:[%s693 + $0x1c] sm:$0xf]
        %v1931 = vld [vmem:[%s696] sm:$0x1]
        %v1933 = vlaneseq
        %v1934 = vshrl.u32 %v1933, 7
        %v1935 = vsub.s32 0, %v1934
        %v1936 = vrot.slane %v1931, %v1935
        %v1946 = vunpack.c.l.b16 %v1923
        %v1947 = vunpack.c.l.b16 %v1924
        %v1948 = vunpack.c.l.b16 %v1925
        %v1949 = vunpack.c.l.b16 %v1926
        %v1950 = vunpack.c.l.b16 %v1927
        %v1951 = vunpack.c.l.b16 %v1928
        %v1952 = vunpack.c.l.b16 %v1929
        %v1953 = vunpack.c.l.b16 %v1930
        %v1954 = vpack.c.b16 %v1947, %v1946
        %v1955 = vpack.c.b16 %v1949, %v1948
        %v1956 = vpack.c.b16 %v1951, %v1950
        %v1957 = vpack.c.b16 %v1953, %v1952
        %vm1962 = vcmask 523264
        %v1964 = vsel %vm1962, %v1922, 0
        %1966 = vmatprep.subr.bf16.mxu0 0
        %1967 = vmatpush1.bf16.msra.mxu0 %v1954
        %1968 = vmatprep.subr.bf16.mxu0 0
        %1969 = vmatpush1.bf16.msra.mxu0 %v1955
        %1970 = vmatprep.subr.bf16.mxu0 0
        %1971 = vmatpush1.bf16.msra.mxu0 %v1956
        %1972 = vmatprep.subr.bf16.mxu0 0
        %1973 = vmatpush1.bf16.msra.mxu0 %v1957
        %1974 = vmatprep.subr.bf16.mxu0 0
        %1975 = vmatpush1.bf16.msra.mxu0 0
        %1976 = vmatprep.subr.bf16.mxu0 0
        %1977 = vmatpush1.bf16.msra.mxu0 0
        %1978 = vmatprep.subr.bf16.mxu0 0
        %1979 = vmatpush1.bf16.msra.mxu0 0
        %1980 = vmatprep.subr.bf16.mxu0 0
        %1981 = vmatpush1.bf16.msra.mxu0 0
        %1982 = vmatprep.subr.bf16.mxu0 0
        %1983 = vmatpush1.bf16.msra.mxu0 0
        %1984 = vmatprep.subr.bf16.mxu0 0
        %1985 = vmatpush1.bf16.msra.mxu0 0
        %1986 = vmatprep.subr.bf16.mxu0 0
        %1987 = vmatpush1.bf16.msra.mxu0 0
        %1988 = vmatprep.subr.bf16.mxu0 0
        %1989 = vmatpush1.bf16.msra.mxu0 0
        %1990 = vmatprep.subr.bf16.mxu0 0
        %1991 = vmatpush1.bf16.msra.mxu0 0
        %1992 = vmatprep.subr.bf16.mxu0 0
        %1993 = vmatpush1.bf16.msra.mxu0 0
        %1994 = vmatprep.subr.bf16.mxu0 0
        %1995 = vmatpush1.bf16.msra.mxu0 0
        %1996 = vmatprep.subr.bf16.mxu0 0
        %1997 = vmatpush1.bf16.msra.mxu0 0
        %1998 = vmatprep.mubr.bf16.mxu0 0
        %1999 = vmatmul.mubr.bf16.gmra.mrb[0].mxu0 %v1964
        %v2000 = vpop.f32.mrb[0].mxu0
        %v2001 = vadd.f32 %v1936, %v2000
        %v2002 = vpop.f32.mrb[0].mxu0
        %v2003 = vpop.f32.mrb[0].mxu0
        %v2004 = vadd.f32 %v1936, %v2003
        %v2005 = vpop.f32.mrb[0].mxu0
        %2006 = vdwg.mxu0
        %v2007 = vadd.f32 %v1806, %v2001
        %v2008 = vadd.f32 %v1807, %v2004
        %2009 = vst.msk [vmem:[#allocation2] sm:$0xff] %vm712, %v2007
        %2010 = vst.msk [vmem:[#allocation2 + $0x8] sm:$0xff] %vm712, %v2008
        %p2011 = scmp.eq.s32.totalorder %s37, 1
        // Predicated region
        $region93: #{tpu_custom_call.1} parent=71 // pred_check
          %p2012 = pneg %p2011
        $region94: #{tpu_custom_call.1} parent=71 // pred_check_branch
          %2014 = sbr.rel (%p2012) target = $region96
        $region95: #{tpu_custom_call.1} parent=71 // pred_region
          %2015 = vst.msk [vmem:[#allocation11] sm:$0xff] %vm712, %v2007
          %2016 = vst.msk [vmem:[#allocation11 + $0x8] sm:$0xff] %vm712, %v2008
        $region96: #{tpu_custom_call.1} parent=71 // pred_fallthru
          _
        // Predicated region
        $region97: #{tpu_custom_call.1} parent=71 // pred_check
          %p2017 = pneg %p400
        $region98: #{tpu_custom_call.1} parent=71 // pred_check_branch
          %2019 = sbr.rel (%p2017) target = $region100
        $region99: #{tpu_custom_call.1} parent=71 // pred_region
          %s2020 = smul.u32 2, %s36
          %s2022 = ssub.s32 256, 256
          %2023 = vsyncadd [#allocation5], %s2022
          %s2024 = smul.addr %s2020, 128
          %s2025 = scalar_lea.hbm %s13, %s2024
          %s2026 = sshll.u32 [#allocation11], 4
          %s2027 = int_to_ptr.vmem [resolvable:$true] %s2026
          %2032 = dma.vmem_to_hbm [thread:$0]  %s2027, 256, %s2025, [#allocation5], 128, 128, 8
        $region100: #{tpu_custom_call.1} parent=71 // pred_fallthru
          _
        // Predicated region
        $region101: #{tpu_custom_call.1} parent=71 // pred_check
          %p2033 = pneg %p400
        $region102: #{tpu_custom_call.1} parent=71 // pred_check_branch
          %2035 = sbr.rel (%p2033) target = $region104
        $region103: #{tpu_custom_call.1} parent=71 // pred_region
          %2036 = dma.done [#allocation5], 256
        $region104: #{tpu_custom_call.1} parent=71 // pred_fallthru
          _
      $region72: #{tpu_custom_call.1} parent=5 // pred_fallthru
        _
      %p2037 = scmp.le.s32.totalorder 2, %s27
      // Predicated region
      $region105: #{tpu_custom_call.1} parent=5 // pred_check
        %p2038 = pneg %p2037
      $region106: #{tpu_custom_call.1} parent=5 // pred_check_branch
        %2040 = sbr.rel (%p2038) target = $region108
      $region107: #{tpu_custom_call.1} parent=5 // pred_region
        %s2041 = ssub.s32 %s27, 2
      $region108: #{tpu_custom_call.1} parent=5 // pred_fallthru
        _
    $region6: #{tpu_custom_call.1} parent=1 // loop_footer
      %s31 = sadd.s32 1, %s27
    $region7: #{tpu_custom_call.1} parent=1 // loop_footer_branch
      %26 = sbr.rel target = $region3
    $region8: #{tpu_custom_call.1} parent=1 // loop_exit
      _
    %2042 = vsyncpa [#allocation4], 1
    %s2043 = scalar_lea.sflag [#allocation4], 1
    %2044 = vsyncpa %s2043, 1
    %2045 = vsyncpa [#allocation7], 1
    %s2046 = scalar_lea.sflag [#allocation7], 1
    %2047 = vsyncpa %s2046, 1
    %2048 = vsyncpa [#allocation10], 1
    %s2049 = scalar_lea.sflag [#allocation10], 1
    %2050 = vsyncpa %s2049, 1
    %2051 = vsyncpa [#allocation5], 1
    %s2052 = scalar_lea.sflag [#allocation5], 1
    %2053 = vsyncpa %s2052, 1

</llo_original>
